<compile_context>
chip_gen: v6e
topology: v6e:2x2x1
jax: 0.10.0
libtpu: 0.0.40
codegen_flags: <defaults>
</compile_context>

<pallas_src>
import functools

import jax
import jax.numpy as jnp
import numpy as np
from jax.experimental import pallas as pl
from jax.experimental.pallas import tpu as pltpu


# ----------------------------------------------------------------------------
# Single fused kernel: attention branch + main branch, no grid.
# ----------------------------------------------------------------------------
def chanal_kernel(x_ref, w1_ref, wf_ref, att_ref, w2_hbm, o_ref, w2_vmem, w2_sem,
                  *, n_classes, shots):
    f32 = jnp.float32

    # Kick off the DMA of the largest operand (conv2 band, ~200 KB) immediately;
    # it overlaps with the attention branch and the conv1 matmul below.
    w2_copy = pltpu.make_async_copy(w2_hbm, w2_vmem, w2_sem)
    w2_copy.start()

    N, S = n_classes, shots
    ND = x_ref.shape[1]
    D = ND // N

    x = x_ref[...]                                           # (xr_p, N*D) lane slab

    # ---------------- attention branch (VPU/EUP only, no MXU) ----------------
    # per-(class, feature) mean over shots, kept in the lane-slab layout
    m_slab = jnp.mean(x[:S, :], axis=0, keepdims=True)       # (1, N*D)
    # class mean/min/max as an elementwise tree over the N lane groups
    parts = [m_slab[:, n * D:(n + 1) * D] for n in range(N)]  # N x (1, D)
    c_sum, c_min, c_max = parts[0], parts[0], parts[0]
    for p in parts[1:]:
        c_sum = c_sum + p
        c_min = jnp.minimum(c_min, p)
        c_max = jnp.maximum(c_max, p)
    c_mean = c_sum * (1.0 / N)                               # (1, D)

    ap = att_ref[...]                                        # (96, 8) packed attn weights
    # conv3 (1->32, k=3, pad=1) + relu as broadcast mul-adds (no padded MXU op)
    h3 = jnp.maximum(ap[:, 0:1] * c_mean + ap[:, 1:2] * c_min
                     + ap[:, 2:3] * c_max + ap[:, 3:4], 0.0)  # (96, D)
    # conv4 (32->1, k=3, stride=3) + sigmoid as multiply + sublane reduce
    att = jax.nn.sigmoid(jnp.sum(ap[:, 4:5] * h3, axis=0, keepdims=True)
                         + ap[0:1, 5:6])                      # (1, D)

    # ---------------- main branch (banded conv -> one matmul per layer) -------
    # biases are folded into the band matrices (ones row propagates through h1/h2)
    h1 = jnp.maximum(
        jnp.dot(w1_ref[...], x, preferred_element_type=f32), 0.0)       # (r1_p, N*D)
    w2_copy.wait()                                                        # conv2 weights ready
    h2 = jnp.maximum(
        jnp.dot(w2_vmem[...], h1, preferred_element_type=f32), 0.0)      # (r2_p, N*D)
    # TODO(synk): nn.Dropout() is treated as identity (inference / eval mode).
    fea = jnp.dot(wf_ref[...], h2, preferred_element_type=f32)           # (1, N*D)

    # broadcast the per-feature attention map across the class lane groups
    att_slab = jnp.concatenate([att] * N, axis=1)                         # (1, N*D)
    o_ref[...] = jnp.maximum(att_slab * fea, 0.0)


# ----------------------------------------------------------------------------
# One-time, host-side (numpy) parameter preprocessing.
# A conv with kernel K, padding `pad`, stride `stride` along height becomes a
# (C_out*H_out, [C_in*]H_in) band matrix; zero-padding folds into it.
# ----------------------------------------------------------------------------
def _ceil_to(n, m):
    return -(-n // m) * m


def _band_1ch(w, H_in, H_out, K, pad, stride=1):
    # w: (C_out, K)  ->  (C_out*H_out, H_in)
    C_out = w.shape[0]
    h = np.arange(H_out)[:, None]
    s = np.arange(H_in)[None, :]
    k = s - stride * h + pad
    valid = ((k >= 0) & (k < K)).astype(np.float32)           # (H_out, H_in)
    kc = np.clip(k, 0, K - 1)
    band = w[:, kc] * valid[None]                              # (C_out, H_out, H_in)
    return band.reshape(C_out * H_out, H_in).astype(np.float32)


def _band_mch(w, H_in, H_out, K, pad, stride=1):
    # w: (C_out, C_in, K)  ->  (C_out*H_out, C_in*H_in)
    C_out, C_in, _ = w.shape
    h = np.arange(H_out)[:, None]
    s = np.arange(H_in)[None, :]
    k = s - stride * h + pad
    valid = ((k >= 0) & (k < K)).astype(np.float32)            # (H_out, H_in)
    kc = np.clip(k, 0, K - 1)
    band = w[:, :, kc] * valid[None, None]                     # (C_out, C_in, H_out, H_in)
    band = np.transpose(band, (0, 2, 1, 3))                    # (C_out, H_out, C_in, H_in)
    return band.reshape(C_out * H_out, C_in * H_in).astype(np.float32)


def preprocess_params(params, shots):
    """Runs ONCE (pure numpy).  Returns the 4 packed operands the kernel consumes."""
    w1, b1, w2, b2, wf, bf, w3, b3, w4, b4 = (np.asarray(p, np.float32) for p in params)
    S = shots
    pad = S // 2
    C1, C2, C3 = w1.shape[0], w2.shape[0], w3.shape[0]

    # conv output heights exactly as PyTorch Conv2d computes them
    H1 = S + 2 * pad - S + 1                                   # conv1
    H2 = H1 + 2 * pad - S + 1                                  # conv2
    Hf = (H2 - S) // S + 1                                     # conv_final (stride = S)
    assert Hf == 1, "wrapper assumes the module's standard odd-`shots` configuration"

    w1b = _band_1ch(w1[:, 0, :, 0], S, H1, S, pad)             # (C1*H1, S)
    w2b = _band_mch(w2[:, :, :, 0], H1, H2, S, pad)            # (C2*H2, C1*H1)
    wfb = _band_mch(wf[:, :, :, 0], H2, Hf, S, 0, stride=S)    # (1, C2*H2)
    w3b = _band_1ch(w3[:, 0, :, 0], 3, 3, 3, 1)                # (3*C3, 3)
    w4b = _band_mch(w4[:, :, :, 0], 3, 1, 3, 0, stride=3)      # (1, 3*C3)

    xr_p = _ceil_to(S + 1, 8)
    r1_p = _ceil_to(C1 * H1 + 1, 8)
    r2_p = _ceil_to(C2 * H2 + 1, 8)

    # conv1 band with b1 folded (consumes the ones row of x_aug) + ones propagator
    w1_full = np.zeros((r1_p, xr_p), np.float32)
    w1_full[:C1 * H1, :S] = w1b
    w1_full[:C1 * H1, S] = np.repeat(b1, H1)
    w1_full[C1 * H1, S] = 1.0                                  # h1 row C1*H1 == 1 everywhere

    # conv2 band with b2 folded + ones propagator
    w2_full = np.zeros((r2_p, r1_p), np.float32)
    w2_full[:C2 * H2, :C1 * H1] = w2b
    w2_full[:C2 * H2, C1 * H1] = np.repeat(b2, H2)
    w2_full[C2 * H2, C1 * H1] = 1.0                            # h2 row C2*H2 == 1 everywhere

    # conv_final row with bf folded
    wf_full = np.zeros((1, r2_p), np.float32)
    wf_full[0, :C2 * H2] = wfb[0]
    wf_full[0, C2 * H2] = bf[0]

    # attention branch packed into a single small buffer:
    #   cols 0..2 : conv3 coefficients of (class-mean, class-min, class-max)
    #   col  3    : b3 (per output row), col 4 : conv4 row, col 5 : b4
    att_pack = np.zeros((3 * C3, 8), np.float32)
    att_pack[:, 0:3] = w3b
    att_pack[:, 3] = np.repeat(b3, 3)
    att_pack[:, 4] = w4b[0]
    att_pack[:, 5] = b4[0]

    return w1_full, w2_full, wf_full, att_pack


# ----------------------------------------------------------------------------
# Per-call forward (jitted): tiny slab glue + one fused pallas_call.
# ----------------------------------------------------------------------------
@jax.jit
def chanal_forward(protot, w1_full, w2_full, wf_full, att_pack):
    N, _, S, D = protot.shape
    ND = N * D
    xr_p = w1_full.shape[1]
    r1_p = w2_full.shape[1]
    r2_p = w2_full.shape[0]

    # classes batched into the lane dimension, ones row for the folded biases,
    # zero rows up to the sublane-aligned height.
    x_slab = jnp.transpose(protot[:, 0], (1, 0, 2)).reshape(S, ND)
    rows = [x_slab, jnp.ones((1, ND), jnp.float32)]
    if xr_p > S + 1:
        rows.append(jnp.zeros((xr_p - S - 1, ND), jnp.float32))
    x_aug = jnp.concatenate(rows, axis=0)                      # (xr_p, N*D)

    out_slab = pl.pallas_call(
        functools.partial(chanal_kernel, n_classes=N, shots=S),
        out_shape=jax.ShapeDtypeStruct((1, ND), jnp.float32),
        in_specs=[
            pl.BlockSpec(memory_space=pltpu.MemorySpace.VMEM),  # x_aug
            pl.BlockSpec(memory_space=pltpu.MemorySpace.VMEM),  # w1_full (+b1, +ones row)
            pl.BlockSpec(memory_space=pltpu.MemorySpace.VMEM),  # wf_full (+bf)
            pl.BlockSpec(memory_space=pltpu.MemorySpace.VMEM),  # att_pack
            pl.BlockSpec(memory_space=pl.ANY),                  # w2_full: manual overlapped DMA
        ],
        out_specs=pl.BlockSpec(memory_space=pltpu.MemorySpace.VMEM),
        scratch_shapes=[
            pltpu.VMEM((r2_p, r1_p), jnp.float32),              # conv2 band landing buffer
            pltpu.SemaphoreType.DMA,                            # its DMA semaphore
        ],
    )(x_aug, w1_full, wf_full, att_pack, w2_full)

    return out_slab.reshape(N, D)                               # matches .squeeze()


# ----------------------------------------------------------------------------
# Pure-JAX reference (lax.conv) for verification
# ----------------------------------------------------------------------------
def reference(protot, params):
    w1, b1, w2, b2, wf, bf, w3, b3, w4, b4 = params
    S = protot.shape[2]
    pad = S // 2

    def conv(x, w, b, stride=(1, 1), padding=((0, 0), (0, 0))):
        y = jax.lax.conv_general_dilated(
            x, w, window_strides=stride, padding=padding,
            dimension_numbers=("NCHW", "OIHW", "NCHW"))
        return y + b[None, :, None, None]

    h1 = jax.nn.relu(conv(protot, w1, b1, padding=((pad, pad), (0, 0))))
    h2 = jax.nn.relu(conv(h1, w2, b2, padding=((pad, pad), (0, 0))))

    p2 = jnp.mean(protot[:, 0], axis=1)                          # (N, D)
    p2 = jnp.stack([p2.mean(0), p2.min(0), p2.max(0)], axis=0)   # (3, D)
    p2 = p2[None, None]                                          # (1, 1, 3, D)
    h3 = jax.nn.relu(conv(p2, w3, b3, padding=((1, 1), (0, 0))))
    h4 = jax.nn.sigmoid(conv(h3, w4, b4, stride=(3, 1)))         # (1, 1, 1, D)

    ff = conv(h2, wf, bf, stride=(S, 1))                         # (N, 1, 1, D)
    out = jax.nn.relu(h4 * ff)
    return out[:, 0, 0, :]


def init_params(key, shots):
    ks = jax.random.split(key, 10)

    def w(k, shape, scale):
        return (scale * jax.random.normal(k, shape)).astype(jnp.float32)

    w1 = w(ks[0], (32, 1, shots, 1), 0.2)
    b1 = w(ks[1], (32,), 0.1)
    w2 = w(ks[2], (64, 32, shots, 1), 0.1)
    b2 = w(ks[3], (64,), 0.1)
    wf = w(ks[4], (1, 64, shots, 1), 0.1)
    bf = w(ks[5], (1,), 0.1)
    w3 = w(ks[6], (32, 1, 3, 1), 0.2)
    b3 = w(ks[7], (32,), 0.1)
    w4 = w(ks[8], (1, 32, 3, 1), 0.1)
    b4 = w(ks[9], (1,), 0.1)
    return (w1, b1, w2, b2, wf, bf, w3, b3, w4, b4)


if __name__ == "__main__":
    shots, n_classes, feat_dim = 5, 4, 128
    key = jax.random.PRNGKey(0)
    kx, kp = jax.random.split(key)

    protot = jax.random.normal(kx, (n_classes, 1, shots, feat_dim), dtype=jnp.float32)
    params = init_params(kp, shots)

    # One-time host-side (numpy) preprocessing -- hoisted off the per-call path.
    w1_full, w2_full, wf_full, att_pack = (
        jnp.asarray(a) for a in preprocess_params(params, shots))

    out = chanal_forward(protot, w1_full, w2_full, wf_full, att_pack)
    out = jax.block_until_ready(out)
    assert out.shape == (n_classes, feat_dim)

    ref = jax.block_until_ready(reference(protot, params))
    np.testing.assert_allclose(np.asarray(out), np.asarray(ref), rtol=1e-4, atol=1e-4)

    print("KERNEL_OK")
</pallas_src>

<mosaic_0001>
module attributes {stable_mosaic.version = 11 : i64} {
  func.func @chanal_kernel(%arg0: memref<8x512xf32, #tpu.memory_space<vmem>>, %arg1: memref<168x8xf32, #tpu.memory_space<vmem>>, %arg2: memref<1x328xf32, #tpu.memory_space<vmem>>, %arg3: memref<96x8xf32, #tpu.memory_space<vmem>>, %arg4: memref<328x168xf32, #tpu.memory_space<any>>, %arg5: memref<1x512xf32, #tpu.memory_space<vmem>>, %arg6: memref<328x168xf32, #tpu.memory_space<vmem>>, %arg7: memref<!tpu.dma_semaphore, #tpu.memory_space<semaphore_mem>>) attributes {dimension_semantics = [], scalar_prefetch = 0 : i64, scratch_operands = 2 : i64, tpu.core_type = #tpu.core_type<tc>} {
    tpu.enqueue_dma source(%arg4 : memref<328x168xf32, #tpu.memory_space<any>>) target(%arg6 : memref<328x168xf32, #tpu.memory_space<vmem>>) target_semaphore(%arg7 : memref<!tpu.dma_semaphore, #tpu.memory_space<semaphore_mem>>)
    %c0 = arith.constant 0 : index
    %c0_0 = arith.constant 0 : index
    %0 = vector.load %arg0[%c0, %c0_0] : memref<8x512xf32, #tpu.memory_space<vmem>>, vector<8x512xf32>
    %1 = vector.extract_strided_slice %0 {offsets = [0, 0], sizes = [5, 512], strides = [1, 1]} : vector<8x512xf32> to vector<5x512xf32>
    %cst = arith.constant dense<0.000000e+00> : vector<512xf32>
    %2 = vector.multi_reduction <add>, %1, %cst [0] : vector<5x512xf32> to vector<512xf32>
    %3 = vector.shape_cast %2 : vector<512xf32> to vector<1x512xf32>
    %cst_1 = arith.constant 5.000000e+00 : f32
    %4 = vector.broadcast %cst_1 : f32 to vector<1x512xf32>
    %5 = arith.divf %3, %4 : vector<1x512xf32>
    %6 = vector.extract_strided_slice %5 {offsets = [0, 0], sizes = [1, 128], strides = [1, 1]} : vector<1x512xf32> to vector<1x128xf32>
    %7 = vector.extract_strided_slice %5 {offsets = [0, 128], sizes = [1, 128], strides = [1, 1]} : vector<1x512xf32> to vector<1x128xf32>
    %8 = vector.extract_strided_slice %5 {offsets = [0, 256], sizes = [1, 128], strides = [1, 1]} : vector<1x512xf32> to vector<1x128xf32>
    %9 = vector.extract_strided_slice %5 {offsets = [0, 384], sizes = [1, 128], strides = [1, 1]} : vector<1x512xf32> to vector<1x128xf32>
    %10 = arith.addf %6, %7 : vector<1x128xf32>
    %11 = arith.minimumf %6, %7 : vector<1x128xf32>
    %12 = arith.maximumf %6, %7 : vector<1x128xf32>
    %13 = arith.addf %10, %8 : vector<1x128xf32>
    %14 = arith.minimumf %11, %8 : vector<1x128xf32>
    %15 = arith.maximumf %12, %8 : vector<1x128xf32>
    %16 = arith.addf %13, %9 : vector<1x128xf32>
    %17 = arith.minimumf %14, %9 : vector<1x128xf32>
    %18 = arith.maximumf %15, %9 : vector<1x128xf32>
    %cst_2 = arith.constant 2.500000e-01 : f32
    %19 = vector.broadcast %cst_2 : f32 to vector<1x128xf32>
    %20 = arith.mulf %16, %19 : vector<1x128xf32>
    %c0_3 = arith.constant 0 : index
    %c0_4 = arith.constant 0 : index
    %21 = vector.load %arg3[%c0_3, %c0_4] : memref<96x8xf32, #tpu.memory_space<vmem>>, vector<96x8xf32>
    %22 = vector.extract_strided_slice %21 {offsets = [0, 0], sizes = [96, 1], strides = [1, 1]} : vector<96x8xf32> to vector<96x1xf32>
    %23 = vector.broadcast %22 : vector<96x1xf32> to vector<96x128xf32>
    %24 = vector.broadcast %20 : vector<1x128xf32> to vector<96x128xf32>
    %25 = arith.mulf %23, %24 : vector<96x128xf32>
    %26 = vector.extract_strided_slice %21 {offsets = [0, 1], sizes = [96, 1], strides = [1, 1]} : vector<96x8xf32> to vector<96x1xf32>
    %27 = vector.broadcast %26 : vector<96x1xf32> to vector<96x128xf32>
    %28 = vector.broadcast %17 : vector<1x128xf32> to vector<96x128xf32>
    %29 = arith.mulf %27, %28 : vector<96x128xf32>
    %30 = arith.addf %25, %29 : vector<96x128xf32>
    %31 = vector.extract_strided_slice %21 {offsets = [0, 2], sizes = [96, 1], strides = [1, 1]} : vector<96x8xf32> to vector<96x1xf32>
    %32 = vector.broadcast %31 : vector<96x1xf32> to vector<96x128xf32>
    %33 = vector.broadcast %18 : vector<1x128xf32> to vector<96x128xf32>
    %34 = arith.mulf %32, %33 : vector<96x128xf32>
    %35 = arith.addf %30, %34 : vector<96x128xf32>
    %36 = vector.extract_strided_slice %21 {offsets = [0, 3], sizes = [96, 1], strides = [1, 1]} : vector<96x8xf32> to vector<96x1xf32>
    %37 = vector.broadcast %36 : vector<96x1xf32> to vector<96x128xf32>
    %38 = arith.addf %35, %37 : vector<96x128xf32>
    %cst_5 = arith.constant 0.000000e+00 : f32
    %39 = vector.broadcast %cst_5 : f32 to vector<96x128xf32>
    %40 = arith.maximumf %38, %39 : vector<96x128xf32>
    %41 = vector.extract_strided_slice %21 {offsets = [0, 4], sizes = [96, 1], strides = [1, 1]} : vector<96x8xf32> to vector<96x1xf32>
    %42 = vector.broadcast %41 : vector<96x1xf32> to vector<96x128xf32>
    %43 = arith.mulf %42, %40 : vector<96x128xf32>
    %cst_6 = arith.constant dense<0.000000e+00> : vector<128xf32>
    %44 = vector.multi_reduction <add>, %43, %cst_6 [0] : vector<96x128xf32> to vector<128xf32>
    %45 = vector.shape_cast %44 : vector<128xf32> to vector<1x128xf32>
    %46 = vector.extract_strided_slice %21 {offsets = [0, 5], sizes = [1, 1], strides = [1, 1]} : vector<96x8xf32> to vector<1x1xf32>
    %47 = vector.broadcast %46 : vector<1x1xf32> to vector<1x128xf32>
    %48 = arith.addf %45, %47 : vector<1x128xf32>
    %49 = arith.negf %48 : vector<1x128xf32>
    %50 = math.exp %49 : vector<1x128xf32>
    %cst_7 = arith.constant 1.000000e+00 : f32
    %51 = vector.broadcast %cst_7 : f32 to vector<1x128xf32>
    %52 = arith.addf %51, %50 : vector<1x128xf32>
    %53 = arith.divf %51, %52 : vector<1x128xf32>
    %c0_8 = arith.constant 0 : index
    %c0_9 = arith.constant 0 : index
    %54 = vector.load %arg1[%c0_8, %c0_9] : memref<168x8xf32, #tpu.memory_space<vmem>>, vector<168x8xf32>
    %cst_10 = arith.constant dense<0.000000e+00> : vector<168x512xf32>
    %55 = tpu.matmul %54, %0, %cst_10 {dimension_numbers = #tpu.dot_dimension_numbers<[1], [0], [0], [1], [0, 0, 1, 1], [], []>} : vector<168x8xf32>, vector<8x512xf32>, vector<168x512xf32> -> vector<168x512xf32>
    %cst_11 = arith.constant 0.000000e+00 : f32
    %56 = vector.broadcast %cst_11 : f32 to vector<168x512xf32>
    %57 = arith.maximumf %55, %56 : vector<168x512xf32>
    tpu.wait_dma2 semaphore(%arg7 : memref<!tpu.dma_semaphore, #tpu.memory_space<semaphore_mem>>) src(%arg4 : memref<328x168xf32, #tpu.memory_space<any>>) dst(%arg6 : memref<328x168xf32, #tpu.memory_space<vmem>>)
    %c0_12 = arith.constant 0 : index
    %c0_13 = arith.constant 0 : index
    %58 = vector.load %arg6[%c0_12, %c0_13] : memref<328x168xf32, #tpu.memory_space<vmem>>, vector<328x168xf32>
    %cst_14 = arith.constant dense<0.000000e+00> : vector<328x512xf32>
    %59 = tpu.matmul %58, %57, %cst_14 {dimension_numbers = #tpu.dot_dimension_numbers<[1], [0], [0], [1], [0, 0, 1, 1], [], []>} : vector<328x168xf32>, vector<168x512xf32>, vector<328x512xf32> -> vector<328x512xf32>
    %cst_15 = arith.constant 0.000000e+00 : f32
    %60 = vector.broadcast %cst_15 : f32 to vector<328x512xf32>
    %61 = arith.maximumf %59, %60 : vector<328x512xf32>
    %c0_16 = arith.constant 0 : index
    %c0_17 = arith.constant 0 : index
    %62 = vector.load %arg2[%c0_16, %c0_17] : memref<1x328xf32, #tpu.memory_space<vmem>>, vector<1x328xf32>
    %cst_18 = arith.constant dense<0.000000e+00> : vector<1x512xf32>
    %63 = tpu.matmul %62, %61, %cst_18 {dimension_numbers = #tpu.dot_dimension_numbers<[1], [0], [0], [1], [0, 0, 1, 1], [], []>} : vector<1x328xf32>, vector<328x512xf32>, vector<1x512xf32> -> vector<1x512xf32>
    %64 = tpu.concatenate %53, %53, %53, %53 in 1 : vector<1x128xf32>, vector<1x128xf32>, vector<1x128xf32>, vector<1x128xf32> -> vector<1x512xf32>
    %65 = arith.mulf %64, %63 : vector<1x512xf32>
    %cst_19 = arith.constant 0.000000e+00 : f32
    %66 = vector.broadcast %cst_19 : f32 to vector<1x512xf32>
    %67 = arith.maximumf %65, %66 : vector<1x512xf32>
    %c0_20 = arith.constant 0 : index
    %c0_21 = arith.constant 0 : index
    %68 = vector.load %arg5[%c0_20, %c0_21] : memref<1x512xf32, #tpu.memory_space<vmem>>, vector<1x512xf32>
    tpu.vector_store %arg5[%c0_20, %c0_21], %67 {strides = array<i32>} : memref<1x512xf32, #tpu.memory_space<vmem>>, vector<1x512xf32>,
    return
  }
}

</mosaic_0001>

<llo_original>
// kernel: chanal_forward.1
$region0: #{chanal_forward.1}
  #allocation0 [shape = 'u32[]', space=smem, size = 0x4, offset = 0x4, fixed_abs, tag = 'smem constant byte address 0x4 - core index']
  #allocation1 [shape = 'u32[144,128]{1,0:T(1,128)}', space=vmem, size = 0x12000, scoped, tag = 'internal scratch']
  #allocation2 [shape = 'f32[328,168]{1,0:T(8,128)}', space=vmem, size = 0x52000, scoped, tag = 'scratch operand']
  #allocation3 [shape = 's32[1]{0}', space=sflag, size = 0x4, scoped, tag = 'scratch operand']
  #allocation6 [shape = 's32[]', space=sflag, size = 0x4, offset = 0, fixed_abs, tag = 'sflag constant byte address 0x0 - dummy sync flag']
  %s0 = inlined_call_operand.vmem [shape: f32[8,512], index: 0, kind: input, shape index: {}]
  %s1 = inlined_call_operand.vmem [shape: f32[168,8], index: 1, kind: input, shape index: {}]
  %s2 = inlined_call_operand.vmem [shape: f32[1,328], index: 2, kind: input, shape index: {}]
  %s3 = inlined_call_operand.vmem [shape: f32[96,8], index: 3, kind: input, shape index: {}]
  %s4 = inlined_call_operand.vmem [shape: f32[328,168], index: 4, kind: input, shape index: {}]
  %s5 = inlined_call_operand.hbm [shape: f32[1,512], index: 5, kind: output, shape index: {}]
  %s6 = sld [smem:[#allocation0]]
  $region60: #{chanal_forward.1} parent=0
    _
  %s8 = ssub.s32 1, %s6
  %s9 = scalar_select 0, %s8, %s6
  $region1: #{chanal_forward.1} parent=0
    #allocation4 [shape = 'u8[2048]{0}', space=vmem, size = 0x800, scoped, tag = 'output window, operand 0, single buffered']
    #allocation5 [shape = 's32[1]{0}', space=sflag, size = 0x4, scoped, tag = 'scoped memory for chanal_forward.1']
    %10 = vsyncpa [#allocation5], 0
    // Predicated region
    $region2: #{chanal_forward.1} parent=1 // pred_check
      _
    $region3: #{chanal_forward.1} parent=1 // pred_check_branch
      %12 = sbr.rel (0) target = $region5
    $region4: #{chanal_forward.1} parent=1 // pred_region
      _
    $region5: #{chanal_forward.1} parent=1 // pred_fallthru
      _
    // Predicated region
    $region6: #{chanal_forward.1} parent=1 // pred_check
      _
    $region7: #{chanal_forward.1} parent=1 // pred_check_branch
      %14 = sbr.rel (0) target = $region9
    $region8: #{chanal_forward.1} parent=1 // pred_region
      _
    $region9: #{chanal_forward.1} parent=1 // pred_fallthru
      _
    // Predicated region
    $region10: #{chanal_forward.1} parent=1 // pred_check
      _
    $region11: #{chanal_forward.1} parent=1 // pred_check_branch
      %16 = sbr.rel (0) target = $region13
    $region12: #{chanal_forward.1} parent=1 // pred_region
      _
    $region13: #{chanal_forward.1} parent=1 // pred_fallthru
      _
    // Predicated region
    $region14: #{chanal_forward.1} parent=1 // pred_check
      _
    $region15: #{chanal_forward.1} parent=1 // pred_check_branch
      %18 = sbr.rel (0) target = $region17
    $region16: #{chanal_forward.1} parent=1 // pred_region
      _
    $region17: #{chanal_forward.1} parent=1 // pred_fallthru
      _
    %p20 = scmp.lt.u32.totalorder 656, 8
    %p21 = pneg %p20
    // Predicated region
    $region18: #{chanal_forward.1} parent=1 // pred_check
      _
    $region19: #{chanal_forward.1} parent=1 // pred_check_branch
      %23 = sbr.rel (%p20) target = $region21
    $region20: #{chanal_forward.1} parent=1 // pred_region
      %s39 = sand.u32 656, 7
      %p40 = scmp.eq.s32.totalorder %s39, 0
      // Predicated region
      $region33: #{chanal_forward.1} parent=20 // pred_check
        %p41 = pneg %p40
      $region34: #{chanal_forward.1} parent=20 // pred_check_branch
        %43 = sbr.rel (%p41) target = $region36
      $region35: #{chanal_forward.1} parent=20 // pred_region
        loop: start=0, step=1, limit=1
        $region37: #{chanal_forward.1} parent=35 // loop_pre_header
          _
        $region38: #{chanal_forward.1} parent=35 // loop_header
          %s45 = sphi 0, %s49
          %p46 = scmp.ge.s32.totalorder %s45, 1
          %s50 = sphi %s4, %s4
          %s51 = sphi [#allocation2], [#allocation2]
        $region39: #{chanal_forward.1} parent=35 // loop_header_branch
          %48 = sbr.rel (%p46) target = $region43
        $region40: #{chanal_forward.1} parent=35 // loop_body
          %v52 = vld [vmem:[%s50] sm:$0xff]
          %53 = vst [vmem:[%s51] sm:$0xff] %v52
          %v54 = vld [vmem:[%s50 + $0x8] sm:$0xff]
          %55 = vst [vmem:[%s51 + $0x8] sm:$0xff] %v54
          %v56 = vld [vmem:[%s50 + $0x10] sm:$0xff]
          %57 = vst [vmem:[%s51 + $0x10] sm:$0xff] %v56
          %v58 = vld [vmem:[%s50 + $0x18] sm:$0xff]
          %59 = vst [vmem:[%s51 + $0x18] sm:$0xff] %v58
          %v60 = vld [vmem:[%s50 + $0x20] sm:$0xff]
          %61 = vst [vmem:[%s51 + $0x20] sm:$0xff] %v60
          %v62 = vld [vmem:[%s50 + $0x28] sm:$0xff]
          %63 = vst [vmem:[%s51 + $0x28] sm:$0xff] %v62
          %v64 = vld [vmem:[%s50 + $0x30] sm:$0xff]
          %65 = vst [vmem:[%s51 + $0x30] sm:$0xff] %v64
          %v66 = vld [vmem:[%s50 + $0x38] sm:$0xff]
          %67 = vst [vmem:[%s51 + $0x38] sm:$0xff] %v66
          %v68 = vld [vmem:[%s50 + $0x40] sm:$0xff]
          %69 = vst [vmem:[%s51 + $0x40] sm:$0xff] %v68
          %v70 = vld [vmem:[%s50 + $0x48] sm:$0xff]
          %71 = vst [vmem:[%s51 + $0x48] sm:$0xff] %v70
          %v72 = vld [vmem:[%s50 + $0x50] sm:$0xff]
          %73 = vst [vmem:[%s51 + $0x50] sm:$0xff] %v72
          %v74 = vld [vmem:[%s50 + $0x58] sm:$0xff]
          %75 = vst [vmem:[%s51 + $0x58] sm:$0xff] %v74
          %v76 = vld [vmem:[%s50 + $0x60] sm:$0xff]
          %77 = vst [vmem:[%s51 + $0x60] sm:$0xff] %v76
          %v78 = vld [vmem:[%s50 + $0x68] sm:$0xff]
          %79 = vst [vmem:[%s51 + $0x68] sm:$0xff] %v78
          %v80 = vld [vmem:[%s50 + $0x70] sm:$0xff]
          %81 = vst [vmem:[%s51 + $0x70] sm:$0xff] %v80
          %v82 = vld [vmem:[%s50 + $0x78] sm:$0xff]
          %83 = vst [vmem:[%s51 + $0x78] sm:$0xff] %v82
          %v84 = vld [vmem:[%s50 + $0x80] sm:$0xff]
          %85 = vst [vmem:[%s51 + $0x80] sm:$0xff] %v84
          %v86 = vld [vmem:[%s50 + $0x88] sm:$0xff]
          %87 = vst [vmem:[%s51 + $0x88] sm:$0xff] %v86
          %v88 = vld [vmem:[%s50 + $0x90] sm:$0xff]
          %89 = vst [vmem:[%s51 + $0x90] sm:$0xff] %v88
          %v90 = vld [vmem:[%s50 + $0x98] sm:$0xff]
          %91 = vst [vmem:[%s51 + $0x98] sm:$0xff] %v90
          %v92 = vld [vmem:[%s50 + $0xa0] sm:$0xff]
          %93 = vst [vmem:[%s51 + $0xa0] sm:$0xff] %v92
          %v94 = vld [vmem:[%s50 + $0xa8] sm:$0xff]
          %95 = vst [vmem:[%s51 + $0xa8] sm:$0xff] %v94
          %v96 = vld [vmem:[%s50 + $0xb0] sm:$0xff]
          %97 = vst [vmem:[%s51 + $0xb0] sm:$0xff] %v96
          %v98 = vld [vmem:[%s50 + $0xb8] sm:$0xff]
          %99 = vst [vmem:[%s51 + $0xb8] sm:$0xff] %v98
          %v100 = vld [vmem:[%s50 + $0xc0] sm:$0xff]
          %101 = vst [vmem:[%s51 + $0xc0] sm:$0xff] %v100
          %v102 = vld [vmem:[%s50 + $0xc8] sm:$0xff]
          %103 = vst [vmem:[%s51 + $0xc8] sm:$0xff] %v102
          %v104 = vld [vmem:[%s50 + $0xd0] sm:$0xff]
          %105 = vst [vmem:[%s51 + $0xd0] sm:$0xff] %v104
          %v106 = vld [vmem:[%s50 + $0xd8] sm:$0xff]
          %107 = vst [vmem:[%s51 + $0xd8] sm:$0xff] %v106
          %v108 = vld [vmem:[%s50 + $0xe0] sm:$0xff]
          %109 = vst [vmem:[%s51 + $0xe0] sm:$0xff] %v108
          %v110 = vld [vmem:[%s50 + $0xe8] sm:$0xff]
          %111 = vst [vmem:[%s51 + $0xe8] sm:$0xff] %v110
          %v112 = vld [vmem:[%s50 + $0xf0] sm:$0xff]
          %113 = vst [vmem:[%s51 + $0xf0] sm:$0xff] %v112
          %v114 = vld [vmem:[%s50 + $0xf8] sm:$0xff]
          %115 = vst [vmem:[%s51 + $0xf8] sm:$0xff] %v114
          %v116 = vld [vmem:[%s50 + $0x100] sm:$0xff]
          %117 = vst [vmem:[%s51 + $0x100] sm:$0xff] %v116
          %v118 = vld [vmem:[%s50 + $0x108] sm:$0xff]
          %119 = vst [vmem:[%s51 + $0x108] sm:$0xff] %v118
          %v120 = vld [vmem:[%s50 + $0x110] sm:$0xff]
          %121 = vst [vmem:[%s51 + $0x110] sm:$0xff] %v120
          %v122 = vld [vmem:[%s50 + $0x118] sm:$0xff]
          %123 = vst [vmem:[%s51 + $0x118] sm:$0xff] %v122
          %v124 = vld [vmem:[%s50 + $0x120] sm:$0xff]
          %125 = vst [vmem:[%s51 + $0x120] sm:$0xff] %v124
          %v126 = vld [vmem:[%s50 + $0x128] sm:$0xff]
          %127 = vst [vmem:[%s51 + $0x128] sm:$0xff] %v126
          %v128 = vld [vmem:[%s50 + $0x130] sm:$0xff]
          %129 = vst [vmem:[%s51 + $0x130] sm:$0xff] %v128
          %v130 = vld [vmem:[%s50 + $0x138] sm:$0xff]
          %131 = vst [vmem:[%s51 + $0x138] sm:$0xff] %v130
          %v132 = vld [vmem:[%s50 + $0x140] sm:$0xff]
          %133 = vst [vmem:[%s51 + $0x140] sm:$0xff] %v132
          %v134 = vld [vmem:[%s50 + $0x148] sm:$0xff]
          %135 = vst [vmem:[%s51 + $0x148] sm:$0xff] %v134
          %v136 = vld [vmem:[%s50 + $0x150] sm:$0xff]
          %137 = vst [vmem:[%s51 + $0x150] sm:$0xff] %v136
          %v138 = vld [vmem:[%s50 + $0x158] sm:$0xff]
          %139 = vst [vmem:[%s51 + $0x158] sm:$0xff] %v138
          %v140 = vld [vmem:[%s50 + $0x160] sm:$0xff]
          %141 = vst [vmem:[%s51 + $0x160] sm:$0xff] %v140
          %v142 = vld [vmem:[%s50 + $0x168] sm:$0xff]
          %143 = vst [vmem:[%s51 + $0x168] sm:$0xff] %v142
          %v144 = vld [vmem:[%s50 + $0x170] sm:$0xff]
          %145 = vst [vmem:[%s51 + $0x170] sm:$0xff] %v144
          %v146 = vld [vmem:[%s50 + $0x178] sm:$0xff]
          %147 = vst [vmem:[%s51 + $0x178] sm:$0xff] %v146
          %v148 = vld [vmem:[%s50 + $0x180] sm:$0xff]
          %149 = vst [vmem:[%s51 + $0x180] sm:$0xff] %v148
          %v150 = vld [vmem:[%s50 + $0x188] sm:$0xff]
          %151 = vst [vmem:[%s51 + $0x188] sm:$0xff] %v150
          %v152 = vld [vmem:[%s50 + $0x190] sm:$0xff]
          %153 = vst [vmem:[%s51 + $0x190] sm:$0xff] %v152
          %v154 = vld [vmem:[%s50 + $0x198] sm:$0xff]
          %155 = vst [vmem:[%s51 + $0x198] sm:$0xff] %v154
          %v156 = vld [vmem:[%s50 + $0x1a0] sm:$0xff]
          %157 = vst [vmem:[%s51 + $0x1a0] sm:$0xff] %v156
          %v158 = vld [vmem:[%s50 + $0x1a8] sm:$0xff]
          %159 = vst [vmem:[%s51 + $0x1a8] sm:$0xff] %v158
          %v160 = vld [vmem:[%s50 + $0x1b0] sm:$0xff]
          %161 = vst [vmem:[%s51 + $0x1b0] sm:$0xff] %v160
          %v162 = vld [vmem:[%s50 + $0x1b8] sm:$0xff]
          %163 = vst [vmem:[%s51 + $0x1b8] sm:$0xff] %v162
          %v164 = vld [vmem:[%s50 + $0x1c0] sm:$0xff]
          %165 = vst [vmem:[%s51 + $0x1c0] sm:$0xff] %v164
          %v166 = vld [vmem:[%s50 + $0x1c8] sm:$0xff]
          %167 = vst [vmem:[%s51 + $0x1c8] sm:$0xff] %v166
          %v168 = vld [vmem:[%s50 + $0x1d0] sm:$0xff]
          %169 = vst [vmem:[%s51 + $0x1d0] sm:$0xff] %v168
          %v170 = vld [vmem:[%s50 + $0x1d8] sm:$0xff]
          %171 = vst [vmem:[%s51 + $0x1d8] sm:$0xff] %v170
          %v172 = vld [vmem:[%s50 + $0x1e0] sm:$0xff]
          %173 = vst [vmem:[%s51 + $0x1e0] sm:$0xff] %v172
          %v174 = vld [vmem:[%s50 + $0x1e8] sm:$0xff]
          %175 = vst [vmem:[%s51 + $0x1e8] sm:$0xff] %v174
          %v176 = vld [vmem:[%s50 + $0x1f0] sm:$0xff]
          %177 = vst [vmem:[%s51 + $0x1f0] sm:$0xff] %v176
          %v178 = vld [vmem:[%s50 + $0x1f8] sm:$0xff]
          %179 = vst [vmem:[%s51 + $0x1f8] sm:$0xff] %v178
          %v180 = vld [vmem:[%s50 + $0x200] sm:$0xff]
          %181 = vst [vmem:[%s51 + $0x200] sm:$0xff] %v180
          %v182 = vld [vmem:[%s50 + $0x208] sm:$0xff]
          %183 = vst [vmem:[%s51 + $0x208] sm:$0xff] %v182
          %v184 = vld [vmem:[%s50 + $0x210] sm:$0xff]
          %185 = vst [vmem:[%s51 + $0x210] sm:$0xff] %v184
          %v186 = vld [vmem:[%s50 + $0x218] sm:$0xff]
          %187 = vst [vmem:[%s51 + $0x218] sm:$0xff] %v186
          %v188 = vld [vmem:[%s50 + $0x220] sm:$0xff]
          %189 = vst [vmem:[%s51 + $0x220] sm:$0xff] %v188
          %v190 = vld [vmem:[%s50 + $0x228] sm:$0xff]
          %191 = vst [vmem:[%s51 + $0x228] sm:$0xff] %v190
          %v192 = vld [vmem:[%s50 + $0x230] sm:$0xff]
          %193 = vst [vmem:[%s51 + $0x230] sm:$0xff] %v192
          %v194 = vld [vmem:[%s50 + $0x238] sm:$0xff]
          %195 = vst [vmem:[%s51 + $0x238] sm:$0xff] %v194
          %v196 = vld [vmem:[%s50 + $0x240] sm:$0xff]
          %197 = vst [vmem:[%s51 + $0x240] sm:$0xff] %v196
          %v198 = vld [vmem:[%s50 + $0x248] sm:$0xff]
          %199 = vst [vmem:[%s51 + $0x248] sm:$0xff] %v198
          %v200 = vld [vmem:[%s50 + $0x250] sm:$0xff]
          %201 = vst [vmem:[%s51 + $0x250] sm:$0xff] %v200
          %v202 = vld [vmem:[%s50 + $0x258] sm:$0xff]
          %203 = vst [vmem:[%s51 + $0x258] sm:$0xff] %v202
          %v204 = vld [vmem:[%s50 + $0x260] sm:$0xff]
          %205 = vst [vmem:[%s51 + $0x260] sm:$0xff] %v204
          %v206 = vld [vmem:[%s50 + $0x268] sm:$0xff]
          %207 = vst [vmem:[%s51 + $0x268] sm:$0xff] %v206
          %v208 = vld [vmem:[%s50 + $0x270] sm:$0xff]
          %209 = vst [vmem:[%s51 + $0x270] sm:$0xff] %v208
          %v210 = vld [vmem:[%s50 + $0x278] sm:$0xff]
          %211 = vst [vmem:[%s51 + $0x278] sm:$0xff] %v210
          %v212 = vld [vmem:[%s50 + $0x280] sm:$0xff]
          %213 = vst [vmem:[%s51 + $0x280] sm:$0xff] %v212
          %v214 = vld [vmem:[%s50 + $0x288] sm:$0xff]
          %215 = vst [vmem:[%s51 + $0x288] sm:$0xff] %v214
        $region41: #{chanal_forward.1} parent=35 // loop_footer
          %s49 = sadd.s32 1, %s45
        $region42: #{chanal_forward.1} parent=35 // loop_footer_branch
          %44 = sbr.rel target = $region38
        $region43: #{chanal_forward.1} parent=35 // loop_exit
          _
      $region36: #{chanal_forward.1} parent=20 // pred_fallthru
        _
      %p216 = pneg %p40
      // Predicated region
      $region44: #{chanal_forward.1} parent=20 // pred_check
        _
      $region45: #{chanal_forward.1} parent=20 // pred_check_branch
        %218 = sbr.rel (%p40) target = $region47
      $region46: #{chanal_forward.1} parent=20 // pred_region
        %s219 = sand.u32 656, 7
      $region47: #{chanal_forward.1} parent=20 // pred_fallthru
        _
    $region21: #{chanal_forward.1} parent=1 // pred_fallthru
      _
    // Predicated region
    $region22: #{chanal_forward.1} parent=1 // pred_check
      %p24 = pneg %p20
    $region23: #{chanal_forward.1} parent=1 // pred_check_branch
      %26 = sbr.rel (%p24) target = $region25
    $region24: #{chanal_forward.1} parent=1 // pred_region
      %s27 = sshll.u32 1, 656
      %s28 = ssub.s32 %s27, 1
      loop: start=0, step=1, limit=1
      $region26: #{chanal_forward.1} parent=24 // loop_pre_header
        _
      $region27: #{chanal_forward.1} parent=24 // loop_header
        %s30 = sphi 0, %s34
        %p31 = scmp.ge.s32.totalorder %s30, 1
        %s35 = sphi %s4, %s4
        %s36 = sphi [#allocation2], [#allocation2]
      $region28: #{chanal_forward.1} parent=24 // loop_header_branch
        %33 = sbr.rel (%p31) target = $region32
      $region29: #{chanal_forward.1} parent=24 // loop_body
        %v37 = vld [vmem:[%s35] sm:%s28]
        %38 = vst [vmem:[%s36] sm:%s28] %v37
      $region30: #{chanal_forward.1} parent=24 // loop_footer
        %s34 = sadd.s32 1, %s30
      $region31: #{chanal_forward.1} parent=24 // loop_footer_branch
        %29 = sbr.rel target = $region27
      $region32: #{chanal_forward.1} parent=24 // loop_exit
        _
    $region25: #{chanal_forward.1} parent=1 // pred_fallthru
      _
    // Predicated region
    $region48: #{chanal_forward.1} parent=1 // pred_check
      _
    $region49: #{chanal_forward.1} parent=1 // pred_check_branch
      %222 = sbr.rel (0) target = $region51
    $region50: #{chanal_forward.1} parent=1 // pred_region
      %223 = vsyncadd [#allocation3], 10496
    $region51: #{chanal_forward.1} parent=1 // pred_fallthru
      _
    %v224 = vld [vmem:[%s0] sm:$0xff]
    %v225 = vld [vmem:[%s0 + $0x8] sm:$0xff]
    %v226 = vld [vmem:[%s0 + $0x10] sm:$0xff]
    %v227 = vld [vmem:[%s0 + $0x18] sm:$0xff]
    %vm228 = vcmask 1044480
    %v229 = vsel %vm228, %v224, 0.0
    %v230 = vrot.slane %v229, 4
    %v231 = vadd.f32 %v229, %v230
    %v232 = vrot.slane %v231, 2
    %v233 = vadd.f32 %v231, %v232
    %v234 = vrot.slane %v233, 1
    %v235 = vadd.f32 %v233, %v234
    %v236 = vsel %vm228, %v225, 0.0
    %v237 = vrot.slane %v236, 4
    %v238 = vadd.f32 %v236, %v237
    %v239 = vrot.slane %v238, 2
    %v240 = vadd.f32 %v238, %v239
    %v241 = vrot.slane %v240, 1
    %v242 = vadd.f32 %v240, %v241
    %v243 = vsel %vm228, %v226, 0.0
    %v244 = vrot.slane %v243, 4
    %v245 = vadd.f32 %v243, %v244
    %v246 = vrot.slane %v245, 2
    %v247 = vadd.f32 %v245, %v246
    %v248 = vrot.slane %v247, 1
    %v249 = vadd.f32 %v247, %v248
    %v250 = vsel %vm228, %v227, 0.0
    %v251 = vrot.slane %v250, 4
    %v252 = vadd.f32 %v250, %v251
    %v253 = vrot.slane %v252, 2
    %v254 = vadd.f32 %v252, %v253
    %v255 = vrot.slane %v254, 1
    %v256 = vadd.f32 %v254, %v255
    %v257 = vrcp.pop 5.0
    %v258 = vmul.f32 %v235, %v257
    %v259 = vmul.f32 %v242, %v257
    %v260 = vmul.f32 %v249, %v257
    %v261 = vmul.f32 %v256, %v257
    %v262 = vadd.f32 %v258, %v259
    %v263 = vmin.f32 %v258, %v259
    %v264 = vmax.f32 %v258, %v259
    %v265 = vadd.f32 %v262, %v260
    %v266 = vmin.f32 %v263, %v260
    %v267 = vmax.f32 %v264, %v260
    %v268 = vadd.f32 %v265, %v261
    %v269 = vmin.f32 %v266, %v261
    %v270 = vmax.f32 %v267, %v261
    %v271 = vmul.f32 %v268, 0.25
    %v272 = vld [vmem:[%s3] sm:$0xff]
    %v273 = vld [vmem:[%s3 + $0x8] sm:$0xff]
    %v274 = vld [vmem:[%s3 + $0x10] sm:$0xff]
    %v275 = vld [vmem:[%s3 + $0x18] sm:$0xff]
    %v276 = vld [vmem:[%s3 + $0x20] sm:$0xff]
    %v277 = vld [vmem:[%s3 + $0x28] sm:$0xff]
    %v278 = vld [vmem:[%s3 + $0x30] sm:$0xff]
    %v279 = vld [vmem:[%s3 + $0x38] sm:$0xff]
    %v280 = vld [vmem:[%s3 + $0x40] sm:$0xff]
    %v281 = vld [vmem:[%s3 + $0x48] sm:$0xff]
    %v282 = vld [vmem:[%s3 + $0x50] sm:$0xff]
    %v283 = vld [vmem:[%s3 + $0x58] sm:$0xff]
    %285 = vset.pattern.permute.xlu0 0
    %286 = vperm.xlu0 %285, %v272
    %v287 = vpop.permute.xlu0 %286
    %290 = vset.pattern.permute.xlu0 0
    %291 = vperm.xlu0 %290, %v273
    %v292 = vpop.permute.xlu0 %291
    %295 = vset.pattern.permute.xlu0 0
    %296 = vperm.xlu0 %295, %v274
    %v297 = vpop.permute.xlu0 %296
    %300 = vset.pattern.permute.xlu0 0
    %301 = vperm.xlu0 %300, %v275
    %v302 = vpop.permute.xlu0 %301
    %305 = vset.pattern.permute.xlu0 0
    %306 = vperm.xlu0 %305, %v276
    %v307 = vpop.permute.xlu0 %306
    %310 = vset.pattern.permute.xlu0 0
    %311 = vperm.xlu0 %310, %v277
    %v312 = vpop.permute.xlu0 %311
    %315 = vset.pattern.permute.xlu0 0
    %316 = vperm.xlu0 %315, %v278
    %v317 = vpop.permute.xlu0 %316
    %320 = vset.pattern.permute.xlu0 0
    %321 = vperm.xlu0 %320, %v279
    %v322 = vpop.permute.xlu0 %321
    %325 = vset.pattern.permute.xlu0 0
    %326 = vperm.xlu0 %325, %v280
    %v327 = vpop.permute.xlu0 %326
    %330 = vset.pattern.permute.xlu0 0
    %331 = vperm.xlu0 %330, %v281
    %v332 = vpop.permute.xlu0 %331
    %335 = vset.pattern.permute.xlu0 0
    %336 = vperm.xlu0 %335, %v282
    %v337 = vpop.permute.xlu0 %336
    %340 = vset.pattern.permute.xlu0 0
    %341 = vperm.xlu0 %340, %v283
    %v342 = vpop.permute.xlu0 %341
    %v344 = vmul.f32 %v287, %v271
    %v345 = vmul.f32 %v292, %v271
    %v346 = vmul.f32 %v297, %v271
    %v347 = vmul.f32 %v302, %v271
    %v348 = vmul.f32 %v307, %v271
    %v349 = vmul.f32 %v312, %v271
    %v350 = vmul.f32 %v317, %v271
    %v351 = vmul.f32 %v322, %v271
    %v352 = vmul.f32 %v327, %v271
    %v353 = vmul.f32 %v332, %v271
    %v354 = vmul.f32 %v337, %v271
    %v355 = vmul.f32 %v342, %v271
    %356 = vset.pattern.permute.xlu0 1
    %357 = vperm.xlu0 %356, %v272
    %v358 = vpop.permute.xlu0 %357
    %360 = vset.pattern.permute.xlu0 1
    %361 = vperm.xlu0 %360, %v273
    %v362 = vpop.permute.xlu0 %361
    %364 = vset.pattern.permute.xlu0 1
    %365 = vperm.xlu0 %364, %v274
    %v366 = vpop.permute.xlu0 %365
    %368 = vset.pattern.permute.xlu0 1
    %369 = vperm.xlu0 %368, %v275
    %v370 = vpop.permute.xlu0 %369
    %372 = vset.pattern.permute.xlu0 1
    %373 = vperm.xlu0 %372, %v276
    %v374 = vpop.permute.xlu0 %373
    %376 = vset.pattern.permute.xlu0 1
    %377 = vperm.xlu0 %376, %v277
    %v378 = vpop.permute.xlu0 %377
    %380 = vset.pattern.permute.xlu0 1
    %381 = vperm.xlu0 %380, %v278
    %v382 = vpop.permute.xlu0 %381
    %384 = vset.pattern.permute.xlu0 1
    %385 = vperm.xlu0 %384, %v279
    %v386 = vpop.permute.xlu0 %385
    %388 = vset.pattern.permute.xlu0 1
    %389 = vperm.xlu0 %388, %v280
    %v390 = vpop.permute.xlu0 %389
    %392 = vset.pattern.permute.xlu0 1
    %393 = vperm.xlu0 %392, %v281
    %v394 = vpop.permute.xlu0 %393
    %396 = vset.pattern.permute.xlu0 1
    %397 = vperm.xlu0 %396, %v282
    %v398 = vpop.permute.xlu0 %397
    %400 = vset.pattern.permute.xlu0 1
    %401 = vperm.xlu0 %400, %v283
    %v402 = vpop.permute.xlu0 %401
    %v404 = vmul.f32 %v358, %v269
    %v405 = vmul.f32 %v362, %v269
    %v406 = vmul.f32 %v366, %v269
    %v407 = vmul.f32 %v370, %v269
    %v408 = vmul.f32 %v374, %v269
    %v409 = vmul.f32 %v378, %v269
    %v410 = vmul.f32 %v382, %v269
    %v411 = vmul.f32 %v386, %v269
    %v412 = vmul.f32 %v390, %v269
    %v413 = vmul.f32 %v394, %v269
    %v414 = vmul.f32 %v398, %v269
    %v415 = vmul.f32 %v402, %v269
    %v416 = vadd.f32 %v344, %v404
    %v417 = vadd.f32 %v345, %v405
    %v418 = vadd.f32 %v346, %v406
    %v419 = vadd.f32 %v347, %v407
    %v420 = vadd.f32 %v348, %v408
    %v421 = vadd.f32 %v349, %v409
    %v422 = vadd.f32 %v350, %v410
    %v423 = vadd.f32 %v351, %v411
    %v424 = vadd.f32 %v352, %v412
    %v425 = vadd.f32 %v353, %v413
    %v426 = vadd.f32 %v354, %v414
    %v427 = vadd.f32 %v355, %v415
    %428 = vset.pattern.permute.xlu0 2
    %429 = vperm.xlu0 %428, %v272
    %v430 = vpop.permute.xlu0 %429
    %432 = vset.pattern.permute.xlu0 2
    %433 = vperm.xlu0 %432, %v273
    %v434 = vpop.permute.xlu0 %433
    %436 = vset.pattern.permute.xlu0 2
    %437 = vperm.xlu0 %436, %v274
    %v438 = vpop.permute.xlu0 %437
    %440 = vset.pattern.permute.xlu0 2
    %441 = vperm.xlu0 %440, %v275
    %v442 = vpop.permute.xlu0 %441
    %444 = vset.pattern.permute.xlu0 2
    %445 = vperm.xlu0 %444, %v276
    %v446 = vpop.permute.xlu0 %445
    %448 = vset.pattern.permute.xlu0 2
    %449 = vperm.xlu0 %448, %v277
    %v450 = vpop.permute.xlu0 %449
    %452 = vset.pattern.permute.xlu0 2
    %453 = vperm.xlu0 %452, %v278
    %v454 = vpop.permute.xlu0 %453
    %456 = vset.pattern.permute.xlu0 2
    %457 = vperm.xlu0 %456, %v279
    %v458 = vpop.permute.xlu0 %457
    %460 = vset.pattern.permute.xlu0 2
    %461 = vperm.xlu0 %460, %v280
    %v462 = vpop.permute.xlu0 %461
    %464 = vset.pattern.permute.xlu0 2
    %465 = vperm.xlu0 %464, %v281
    %v466 = vpop.permute.xlu0 %465
    %468 = vset.pattern.permute.xlu0 2
    %469 = vperm.xlu0 %468, %v282
    %v470 = vpop.permute.xlu0 %469
    %472 = vset.pattern.permute.xlu0 2
    %473 = vperm.xlu0 %472, %v283
    %v474 = vpop.permute.xlu0 %473
    %v476 = vmul.f32 %v430, %v270
    %v477 = vmul.f32 %v434, %v270
    %v478 = vmul.f32 %v438, %v270
    %v479 = vmul.f32 %v442, %v270
    %v480 = vmul.f32 %v446, %v270
    %v481 = vmul.f32 %v450, %v270
    %v482 = vmul.f32 %v454, %v270
    %v483 = vmul.f32 %v458, %v270
    %v484 = vmul.f32 %v462, %v270
    %v485 = vmul.f32 %v466, %v270
    %v486 = vmul.f32 %v470, %v270
    %v487 = vmul.f32 %v474, %v270
    %v488 = vadd.f32 %v416, %v476
    %v489 = vadd.f32 %v417, %v477
    %v490 = vadd.f32 %v418, %v478
    %v491 = vadd.f32 %v419, %v479
    %v492 = vadd.f32 %v420, %v480
    %v493 = vadd.f32 %v421, %v481
    %v494 = vadd.f32 %v422, %v482
    %v495 = vadd.f32 %v423, %v483
    %v496 = vadd.f32 %v424, %v484
    %v497 = vadd.f32 %v425, %v485
    %v498 = vadd.f32 %v426, %v486
    %v499 = vadd.f32 %v427, %v487
    %500 = vset.pattern.permute.xlu0 3
    %501 = vperm.xlu0 %500, %v272
    %v502 = vpop.permute.xlu0 %501
    %504 = vset.pattern.permute.xlu0 3
    %505 = vperm.xlu0 %504, %v273
    %v506 = vpop.permute.xlu0 %505
    %508 = vset.pattern.permute.xlu0 3
    %509 = vperm.xlu0 %508, %v274
    %v510 = vpop.permute.xlu0 %509
    %512 = vset.pattern.permute.xlu0 3
    %513 = vperm.xlu0 %512, %v275
    %v514 = vpop.permute.xlu0 %513
    %516 = vset.pattern.permute.xlu0 3
    %517 = vperm.xlu0 %516, %v276
    %v518 = vpop.permute.xlu0 %517
    %520 = vset.pattern.permute.xlu0 3
    %521 = vperm.xlu0 %520, %v277
    %v522 = vpop.permute.xlu0 %521
    %524 = vset.pattern.permute.xlu0 3
    %525 = vperm.xlu0 %524, %v278
    %v526 = vpop.permute.xlu0 %525
    %528 = vset.pattern.permute.xlu0 3
    %529 = vperm.xlu0 %528, %v279
    %v530 = vpop.permute.xlu0 %529
    %532 = vset.pattern.permute.xlu0 3
    %533 = vperm.xlu0 %532, %v280
    %v534 = vpop.permute.xlu0 %533
    %536 = vset.pattern.permute.xlu0 3
    %537 = vperm.xlu0 %536, %v281
    %v538 = vpop.permute.xlu0 %537
    %540 = vset.pattern.permute.xlu0 3
    %541 = vperm.xlu0 %540, %v282
    %v542 = vpop.permute.xlu0 %541
    %544 = vset.pattern.permute.xlu0 3
    %545 = vperm.xlu0 %544, %v283
    %v546 = vpop.permute.xlu0 %545
    %v548 = vadd.f32 %v488, %v502
    %v549 = vadd.f32 %v489, %v506
    %v550 = vadd.f32 %v490, %v510
    %v551 = vadd.f32 %v491, %v514
    %v552 = vadd.f32 %v492, %v518
    %v553 = vadd.f32 %v493, %v522
    %v554 = vadd.f32 %v494, %v526
    %v555 = vadd.f32 %v495, %v530
    %v556 = vadd.f32 %v496, %v534
    %v557 = vadd.f32 %v497, %v538
    %v558 = vadd.f32 %v498, %v542
    %v559 = vadd.f32 %v499, %v546
    %v560 = vmax.f32 %v548, 0.0
    %v561 = vmax.f32 %v549, 0.0
    %v562 = vmax.f32 %v550, 0.0
    %v563 = vmax.f32 %v551, 0.0
    %v564 = vmax.f32 %v552, 0.0
    %v565 = vmax.f32 %v553, 0.0
    %v566 = vmax.f32 %v554, 0.0
    %v567 = vmax.f32 %v555, 0.0
    %v568 = vmax.f32 %v556, 0.0
    %v569 = vmax.f32 %v557, 0.0
    %v570 = vmax.f32 %v558, 0.0
    %v571 = vmax.f32 %v559, 0.0
    %572 = vset.pattern.permute.xlu0 4
    %573 = vperm.xlu0 %572, %v272
    %v574 = vpop.permute.xlu0 %573
    %576 = vset.pattern.permute.xlu0 4
    %577 = vperm.xlu0 %576, %v273
    %v578 = vpop.permute.xlu0 %577
    %580 = vset.pattern.permute.xlu0 4
    %581 = vperm.xlu0 %580, %v274
    %v582 = vpop.permute.xlu0 %581
    %584 = vset.pattern.permute.xlu0 4
    %585 = vperm.xlu0 %584, %v275
    %v586 = vpop.permute.xlu0 %585
    %588 = vset.pattern.permute.xlu0 4
    %589 = vperm.xlu0 %588, %v276
    %v590 = vpop.permute.xlu0 %589
    %592 = vset.pattern.permute.xlu0 4
    %593 = vperm.xlu0 %592, %v277
    %v594 = vpop.permute.xlu0 %593
    %596 = vset.pattern.permute.xlu0 4
    %597 = vperm.xlu0 %596, %v278
    %v598 = vpop.permute.xlu0 %597
    %600 = vset.pattern.permute.xlu0 4
    %601 = vperm.xlu0 %600, %v279
    %v602 = vpop.permute.xlu0 %601
    %604 = vset.pattern.permute.xlu0 4
    %605 = vperm.xlu0 %604, %v280
    %v606 = vpop.permute.xlu0 %605
    %608 = vset.pattern.permute.xlu0 4
    %609 = vperm.xlu0 %608, %v281
    %v610 = vpop.permute.xlu0 %609
    %612 = vset.pattern.permute.xlu0 4
    %613 = vperm.xlu0 %612, %v282
    %v614 = vpop.permute.xlu0 %613
    %616 = vset.pattern.permute.xlu0 4
    %617 = vperm.xlu0 %616, %v283
    %v618 = vpop.permute.xlu0 %617
    %v620 = vmul.f32 %v574, %v560
    %v621 = vmul.f32 %v578, %v561
    %v622 = vmul.f32 %v582, %v562
    %v623 = vmul.f32 %v586, %v563
    %v624 = vmul.f32 %v590, %v564
    %v625 = vmul.f32 %v594, %v565
    %v626 = vmul.f32 %v598, %v566
    %v627 = vmul.f32 %v602, %v567
    %v628 = vmul.f32 %v606, %v568
    %v629 = vmul.f32 %v610, %v569
    %v630 = vmul.f32 %v614, %v570
    %v631 = vmul.f32 %v618, %v571
    %v632 = vadd.f32 %v620, %v621
    %v633 = vadd.f32 %v632, %v622
    %v634 = vadd.f32 %v633, %v623
    %v635 = vadd.f32 %v634, %v624
    %v636 = vadd.f32 %v635, %v625
    %v637 = vadd.f32 %v636, %v626
    %v638 = vadd.f32 %v637, %v627
    %v639 = vadd.f32 %v638, %v628
    %v640 = vadd.f32 %v639, %v629
    %v641 = vadd.f32 %v640, %v630
    %v642 = vadd.f32 %v641, %v631
    %v643 = vrot.slane %v642, 4
    %v644 = vadd.f32 %v642, %v643
    %v645 = vrot.slane %v644, 2
    %v646 = vadd.f32 %v644, %v645
    %v647 = vrot.slane %v646, 1
    %v648 = vadd.f32 %v646, %v647
    %649 = vset.pattern.permute.xlu0 5
    %650 = vperm.xlu0 %649, %v272
    %v651 = vpop.permute.xlu0 %650
    %v653 = vadd.f32 %v648, %v651
    %v654 = vxor.u32 %v653, 2147483648
    %v655 = vmul.f32 %v654, 1.442695
    %v656 = vpow.pop %v655
    %v657 = vadd.f32 %v656, 1.0
    %v658 = vrcp.pop %v657
    %v659 = vmul.f32 1.0, %v658
    %v660 = vld [vmem:[%s1] sm:$0xff]
    %v661 = vld [vmem:[%s1 + $0x8] sm:$0xff]
    %v662 = vld [vmem:[%s1 + $0x10] sm:$0xff]
    %v663 = vld [vmem:[%s1 + $0x18] sm:$0xff]
    %v664 = vld [vmem:[%s1 + $0x20] sm:$0xff]
    %v665 = vld [vmem:[%s1 + $0x28] sm:$0xff]
    %v666 = vld [vmem:[%s1 + $0x30] sm:$0xff]
    %v667 = vld [vmem:[%s1 + $0x38] sm:$0xff]
    %v668 = vld [vmem:[%s1 + $0x40] sm:$0xff]
    %v669 = vld [vmem:[%s1 + $0x48] sm:$0xff]
    %v670 = vld [vmem:[%s1 + $0x50] sm:$0xff]
    %v671 = vld [vmem:[%s1 + $0x58] sm:$0xff]
    %v672 = vld [vmem:[%s1 + $0x60] sm:$0xff]
    %v673 = vld [vmem:[%s1 + $0x68] sm:$0xff]
    %v674 = vld [vmem:[%s1 + $0x70] sm:$0xff]
    %v675 = vld [vmem:[%s1 + $0x78] sm:$0xff]
    %v676 = vld [vmem:[%s1 + $0x80] sm:$0xff]
    %v677 = vld [vmem:[%s1 + $0x88] sm:$0xff]
    %v678 = vld [vmem:[%s1 + $0x90] sm:$0xff]
    %v679 = vld [vmem:[%s1 + $0x98] sm:$0xff]
    %v680 = vld [vmem:[%s1 + $0xa0] sm:$0xff]
    %vm681 = vcmask 64512
    %v683 = vsel %vm681, %v660, 0
    %v686 = vsel %vm681, %v661, 0
    %v689 = vsel %vm681, %v662, 0
    %v692 = vsel %vm681, %v663, 0
    %v695 = vsel %vm681, %v664, 0
    %v698 = vsel %vm681, %v665, 0
    %v701 = vsel %vm681, %v666, 0
    %v704 = vsel %vm681, %v667, 0
    %v707 = vsel %vm681, %v668, 0
    %v710 = vsel %vm681, %v669, 0
    %v713 = vsel %vm681, %v670, 0
    %v716 = vsel %vm681, %v671, 0
    %v719 = vsel %vm681, %v672, 0
    %v722 = vsel %vm681, %v673, 0
    %v725 = vsel %vm681, %v674, 0
    %v728 = vsel %vm681, %v675, 0
    %v731 = vsel %vm681, %v676, 0
    %v734 = vsel %vm681, %v677, 0
    %v737 = vsel %vm681, %v678, 0
    %v740 = vsel %vm681, %v679, 0
    %v743 = vsel %vm681, %v680, 0
    %745 = vmatprep.subr.mxu0 0.0
    %746 = vmatpush1.msra.mxu0 0.0
    %747 = vmatprep.subr.mxu0 0.0
    %748 = vmatpush1.msra.mxu0 0.0
    %749 = vmatprep.subr.mxu0 0.0
    %750 = vmatpush1.msra.mxu0 0.0
    %751 = vmatprep.subr.mxu0 0.0
    %752 = vmatpush1.msra.mxu0 0.0
    %753 = vmatprep.subr.mxu0 0.0
    %754 = vmatpush1.msra.mxu0 0.0
    %755 = vmatprep.subr.mxu0 0.0
    %756 = vmatpush1.msra.mxu0 0.0
    %757 = vmatprep.subr.mxu0 0.0
    %758 = vmatpush1.msra.mxu0 0.0
    %759 = vmatprep.subr.mxu0 0.0
    %760 = vmatpush1.msra.mxu0 0.0
    %761 = vmatprep.subr.mxu0 0.0
    %762 = vmatpush1.msra.mxu0 0.0
    %763 = vmatprep.subr.mxu0 0.0
    %764 = vmatpush1.msra.mxu0 0.0
    %765 = vmatprep.subr.mxu0 0.0
    %766 = vmatpush1.msra.mxu0 0.0
    %767 = vmatprep.subr.mxu0 0.0
    %768 = vmatpush1.msra.mxu0 0.0
    %769 = vmatprep.subr.mxu0 0.0
    %770 = vmatpush1.msra.mxu0 0.0
    %771 = vmatprep.subr.mxu0 0.0
    %772 = vmatpush1.msra.mxu0 0.0
    %773 = vmatprep.subr.mxu0 0.0
    %774 = vmatpush1.msra.mxu0 0.0
    %775 = vmatprep.subr.mxu0 %v225
    %776 = vmatpush1.msra.mxu0 %v224
    %777 = vmatprep.subr.mxu0 0.0
    %778 = vmatpush2.msra.mxu0 0.0
    %779 = vmatprep.subr.mxu0 0.0
    %780 = vmatpush2.msra.mxu0 0.0
    %781 = vmatprep.subr.mxu0 0.0
    %782 = vmatpush2.msra.mxu0 0.0
    %783 = vmatprep.subr.mxu0 0.0
    %784 = vmatpush2.msra.mxu0 0.0
    %785 = vmatprep.subr.mxu0 0.0
    %786 = vmatpush2.msra.mxu0 0.0
    %787 = vmatprep.subr.mxu0 0.0
    %788 = vmatpush2.msra.mxu0 0.0
    %789 = vmatprep.subr.mxu0 0.0
    %790 = vmatpush2.msra.mxu0 0.0
    %791 = vmatprep.subr.mxu0 0.0
    %792 = vmatpush2.msra.mxu0 0.0
    %793 = vmatprep.subr.mxu0 0.0
    %794 = vmatpush2.msra.mxu0 0.0
    %795 = vmatprep.subr.mxu0 0.0
    %796 = vmatpush2.msra.mxu0 0.0
    %797 = vmatprep.subr.mxu0 0.0
    %798 = vmatpush2.msra.mxu0 0.0
    %799 = vmatprep.subr.mxu0 0.0
    %800 = vmatpush2.msra.mxu0 0.0
    %801 = vmatprep.subr.mxu0 0.0
    %802 = vmatpush2.msra.mxu0 0.0
    %803 = vmatprep.subr.mxu0 0.0
    %804 = vmatpush2.msra.mxu0 0.0
    %805 = vmatprep.subr.mxu0 0.0
    %806 = vmatpush2.msra.mxu0 0.0
    %807 = vmatprep.subr.mxu0 0.0
    %808 = vmatpush2.msra.mxu0 0.0
    %809 = vmatprep.mubr.f32.mxu0 0.0
    %810 = vmatmul.mubr.f32.gmra.mxu0 %v683
    %v811 = vpop.f32.mrf.mxu0
    %v812 = vadd.f32 0.0, %v811
    %v813 = vpop.f32.mrf.mxu0
    %v814 = vadd.f32 0.0, %v813
    %815 = vmatprep.mubr.f32.mxu0 0.0
    %816 = vmatmul.mubr.f32.gmra.mxu0 %v686
    %v817 = vpop.f32.mrf.mxu0
    %v818 = vadd.f32 0.0, %v817
    %v819 = vpop.f32.mrf.mxu0
    %v820 = vadd.f32 0.0, %v819
    %821 = vmatprep.mubr.f32.mxu0 0.0
    %822 = vmatmul.mubr.f32.gmra.mxu0 %v689
    %v823 = vpop.f32.mrf.mxu0
    %v824 = vadd.f32 0.0, %v823
    %v825 = vpop.f32.mrf.mxu0
    %v826 = vadd.f32 0.0, %v825
    %827 = vmatprep.mubr.f32.mxu0 0.0
    %828 = vmatmul.mubr.f32.gmra.mxu0 %v692
    %v829 = vpop.f32.mrf.mxu0
    %v830 = vadd.f32 0.0, %v829
    %v831 = vpop.f32.mrf.mxu0
    %v832 = vadd.f32 0.0, %v831
    %833 = vmatprep.mubr.f32.mxu0 0.0
    %834 = vmatmul.mubr.f32.gmra.mxu0 %v695
    %v835 = vpop.f32.mrf.mxu0
    %v836 = vadd.f32 0.0, %v835
    %v837 = vpop.f32.mrf.mxu0
    %v838 = vadd.f32 0.0, %v837
    %839 = vmatprep.mubr.f32.mxu0 0.0
    %840 = vmatmul.mubr.f32.gmra.mxu0 %v698
    %v841 = vpop.f32.mrf.mxu0
    %v842 = vadd.f32 0.0, %v841
    %v843 = vpop.f32.mrf.mxu0
    %v844 = vadd.f32 0.0, %v843
    %845 = vmatprep.mubr.f32.mxu0 0.0
    %846 = vmatmul.mubr.f32.gmra.mxu0 %v701
    %v847 = vpop.f32.mrf.mxu0
    %v848 = vadd.f32 0.0, %v847
    %v849 = vpop.f32.mrf.mxu0
    %v850 = vadd.f32 0.0, %v849
    %851 = vmatprep.mubr.f32.mxu0 0.0
    %852 = vmatmul.mubr.f32.gmra.mxu0 %v704
    %v853 = vpop.f32.mrf.mxu0
    %v854 = vadd.f32 0.0, %v853
    %v855 = vpop.f32.mrf.mxu0
    %v856 = vadd.f32 0.0, %v855
    %857 = vmatprep.mubr.f32.mxu0 0.0
    %858 = vmatmul.mubr.f32.gmra.mxu0 %v707
    %v859 = vpop.f32.mrf.mxu0
    %v860 = vadd.f32 0.0, %v859
    %v861 = vpop.f32.mrf.mxu0
    %v862 = vadd.f32 0.0, %v861
    %863 = vmatprep.mubr.f32.mxu0 0.0
    %864 = vmatmul.mubr.f32.gmra.mxu0 %v710
    %v865 = vpop.f32.mrf.mxu0
    %v866 = vadd.f32 0.0, %v865
    %v867 = vpop.f32.mrf.mxu0
    %v868 = vadd.f32 0.0, %v867
    %869 = vmatprep.mubr.f32.mxu0 0.0
    %870 = vmatmul.mubr.f32.gmra.mxu0 %v713
    %v871 = vpop.f32.mrf.mxu0
    %v872 = vadd.f32 0.0, %v871
    %v873 = vpop.f32.mrf.mxu0
    %v874 = vadd.f32 0.0, %v873
    %875 = vmatprep.mubr.f32.mxu0 0.0
    %876 = vmatmul.mubr.f32.gmra.mxu0 %v716
    %v877 = vpop.f32.mrf.mxu0
    %v878 = vadd.f32 0.0, %v877
    %v879 = vpop.f32.mrf.mxu0
    %v880 = vadd.f32 0.0, %v879
    %881 = vmatprep.mubr.f32.mxu0 0.0
    %882 = vmatmul.mubr.f32.gmra.mxu0 %v719
    %v883 = vpop.f32.mrf.mxu0
    %v884 = vadd.f32 0.0, %v883
    %v885 = vpop.f32.mrf.mxu0
    %v886 = vadd.f32 0.0, %v885
    %887 = vmatprep.mubr.f32.mxu0 0.0
    %888 = vmatmul.mubr.f32.gmra.mxu0 %v722
    %v889 = vpop.f32.mrf.mxu0
    %v890 = vadd.f32 0.0, %v889
    %v891 = vpop.f32.mrf.mxu0
    %v892 = vadd.f32 0.0, %v891
    %893 = vmatprep.mubr.f32.mxu0 0.0
    %894 = vmatmul.mubr.f32.gmra.mxu0 %v725
    %v895 = vpop.f32.mrf.mxu0
    %v896 = vadd.f32 0.0, %v895
    %v897 = vpop.f32.mrf.mxu0
    %v898 = vadd.f32 0.0, %v897
    %899 = vmatprep.mubr.f32.mxu0 0.0
    %900 = vmatmul.mubr.f32.gmra.mxu0 %v728
    %v901 = vpop.f32.mrf.mxu0
    %v902 = vadd.f32 0.0, %v901
    %v903 = vpop.f32.mrf.mxu0
    %v904 = vadd.f32 0.0, %v903
    %905 = vmatprep.mubr.f32.mxu0 0.0
    %906 = vmatmul.mubr.f32.gmra.mxu0 %v731
    %v907 = vpop.f32.mrf.mxu0
    %v908 = vadd.f32 0.0, %v907
    %v909 = vpop.f32.mrf.mxu0
    %v910 = vadd.f32 0.0, %v909
    %911 = vmatprep.mubr.f32.mxu0 0.0
    %912 = vmatmul.mubr.f32.gmra.mxu0 %v734
    %v913 = vpop.f32.mrf.mxu0
    %v914 = vadd.f32 0.0, %v913
    %v915 = vpop.f32.mrf.mxu0
    %v916 = vadd.f32 0.0, %v915
    %917 = vmatprep.mubr.f32.mxu0 0.0
    %918 = vmatmul.mubr.f32.gmra.mxu0 %v737
    %v919 = vpop.f32.mrf.mxu0
    %v920 = vadd.f32 0.0, %v919
    %v921 = vpop.f32.mrf.mxu0
    %v922 = vadd.f32 0.0, %v921
    %923 = vmatprep.mubr.f32.mxu0 0.0
    %924 = vmatmul.mubr.f32.gmra.mxu0 %v740
    %v925 = vpop.f32.mrf.mxu0
    %v926 = vadd.f32 0.0, %v925
    %v927 = vpop.f32.mrf.mxu0
    %v928 = vadd.f32 0.0, %v927
    %929 = vmatprep.mubr.f32.mxu0 0.0
    %930 = vmatmul.mubr.f32.gmra.mxu0 %v743
    %v931 = vpop.f32.mrf.mxu0
    %v932 = vadd.f32 0.0, %v931
    %v933 = vpop.f32.mrf.mxu0
    %v934 = vadd.f32 0.0, %v933
    %935 = vdwg.mxu0
    %936 = vmatprep.subr.mxu0 0.0
    %937 = vmatpush1.msra.mxu0 0.0
    %938 = vmatprep.subr.mxu0 0.0
    %939 = vmatpush1.msra.mxu0 0.0
    %940 = vmatprep.subr.mxu0 0.0
    %941 = vmatpush1.msra.mxu0 0.0
    %942 = vmatprep.subr.mxu0 0.0
    %943 = vmatpush1.msra.mxu0 0.0
    %944 = vmatprep.subr.mxu0 0.0
    %945 = vmatpush1.msra.mxu0 0.0
    %946 = vmatprep.subr.mxu0 0.0
    %947 = vmatpush1.msra.mxu0 0.0
    %948 = vmatprep.subr.mxu0 0.0
    %949 = vmatpush1.msra.mxu0 0.0
    %950 = vmatprep.subr.mxu0 0.0
    %951 = vmatpush1.msra.mxu0 0.0
    %952 = vmatprep.subr.mxu0 0.0
    %953 = vmatpush1.msra.mxu0 0.0
    %954 = vmatprep.subr.mxu0 0.0
    %955 = vmatpush1.msra.mxu0 0.0
    %956 = vmatprep.subr.mxu0 0.0
    %957 = vmatpush1.msra.mxu0 0.0
    %958 = vmatprep.subr.mxu0 0.0
    %959 = vmatpush1.msra.mxu0 0.0
    %960 = vmatprep.subr.mxu0 0.0
    %961 = vmatpush1.msra.mxu0 0.0
    %962 = vmatprep.subr.mxu0 0.0
    %963 = vmatpush1.msra.mxu0 0.0
    %964 = vmatprep.subr.mxu0 0.0
    %965 = vmatpush1.msra.mxu0 0.0
    %966 = vmatprep.subr.mxu0 %v227
    %967 = vmatpush1.msra.mxu0 %v226
    %968 = vmatprep.subr.mxu0 0.0
    %969 = vmatpush2.msra.mxu0 0.0
    %970 = vmatprep.subr.mxu0 0.0
    %971 = vmatpush2.msra.mxu0 0.0
    %972 = vmatprep.subr.mxu0 0.0
    %973 = vmatpush2.msra.mxu0 0.0
    %974 = vmatprep.subr.mxu0 0.0
    %975 = vmatpush2.msra.mxu0 0.0
    %976 = vmatprep.subr.mxu0 0.0
    %977 = vmatpush2.msra.mxu0 0.0
    %978 = vmatprep.subr.mxu0 0.0
    %979 = vmatpush2.msra.mxu0 0.0
    %980 = vmatprep.subr.mxu0 0.0
    %981 = vmatpush2.msra.mxu0 0.0
    %982 = vmatprep.subr.mxu0 0.0
    %983 = vmatpush2.msra.mxu0 0.0
    %984 = vmatprep.subr.mxu0 0.0
    %985 = vmatpush2.msra.mxu0 0.0
    %986 = vmatprep.subr.mxu0 0.0
    %987 = vmatpush2.msra.mxu0 0.0
    %988 = vmatprep.subr.mxu0 0.0
    %989 = vmatpush2.msra.mxu0 0.0
    %990 = vmatprep.subr.mxu0 0.0
    %991 = vmatpush2.msra.mxu0 0.0
    %992 = vmatprep.subr.mxu0 0.0
    %993 = vmatpush2.msra.mxu0 0.0
    %994 = vmatprep.subr.mxu0 0.0
    %995 = vmatpush2.msra.mxu0 0.0
    %996 = vmatprep.subr.mxu0 0.0
    %997 = vmatpush2.msra.mxu0 0.0
    %998 = vmatprep.subr.mxu0 0.0
    %999 = vmatpush2.msra.mxu0 0.0
    %1000 = vmatprep.mubr.f32.mxu0 0.0
    %1001 = vmatmul.mubr.f32.gmra.mxu0 %v683
    %v1002 = vpop.f32.mrf.mxu0
    %v1003 = vadd.f32 0.0, %v1002
    %v1004 = vpop.f32.mrf.mxu0
    %v1005 = vadd.f32 0.0, %v1004
    %1006 = vmatprep.mubr.f32.mxu0 0.0
    %1007 = vmatmul.mubr.f32.gmra.mxu0 %v686
    %v1008 = vpop.f32.mrf.mxu0
    %v1009 = vadd.f32 0.0, %v1008
    %v1010 = vpop.f32.mrf.mxu0
    %v1011 = vadd.f32 0.0, %v1010
    %1012 = vmatprep.mubr.f32.mxu0 0.0
    %1013 = vmatmul.mubr.f32.gmra.mxu0 %v689
    %v1014 = vpop.f32.mrf.mxu0
    %v1015 = vadd.f32 0.0, %v1014
    %v1016 = vpop.f32.mrf.mxu0
    %v1017 = vadd.f32 0.0, %v1016
    %1018 = vmatprep.mubr.f32.mxu0 0.0
    %1019 = vmatmul.mubr.f32.gmra.mxu0 %v692
    %v1020 = vpop.f32.mrf.mxu0
    %v1021 = vadd.f32 0.0, %v1020
    %v1022 = vpop.f32.mrf.mxu0
    %v1023 = vadd.f32 0.0, %v1022
    %1024 = vmatprep.mubr.f32.mxu0 0.0
    %1025 = vmatmul.mubr.f32.gmra.mxu0 %v695
    %v1026 = vpop.f32.mrf.mxu0
    %v1027 = vadd.f32 0.0, %v1026
    %v1028 = vpop.f32.mrf.mxu0
    %v1029 = vadd.f32 0.0, %v1028
    %1030 = vmatprep.mubr.f32.mxu0 0.0
    %1031 = vmatmul.mubr.f32.gmra.mxu0 %v698
    %v1032 = vpop.f32.mrf.mxu0
    %v1033 = vadd.f32 0.0, %v1032
    %v1034 = vpop.f32.mrf.mxu0
    %v1035 = vadd.f32 0.0, %v1034
    %1036 = vmatprep.mubr.f32.mxu0 0.0
    %1037 = vmatmul.mubr.f32.gmra.mxu0 %v701
    %v1038 = vpop.f32.mrf.mxu0
    %v1039 = vadd.f32 0.0, %v1038
    %v1040 = vpop.f32.mrf.mxu0
    %v1041 = vadd.f32 0.0, %v1040
    %1042 = vmatprep.mubr.f32.mxu0 0.0
    %1043 = vmatmul.mubr.f32.gmra.mxu0 %v704
    %v1044 = vpop.f32.mrf.mxu0
    %v1045 = vadd.f32 0.0, %v1044
    %v1046 = vpop.f32.mrf.mxu0
    %v1047 = vadd.f32 0.0, %v1046
    %1048 = vmatprep.mubr.f32.mxu0 0.0
    %1049 = vmatmul.mubr.f32.gmra.mxu0 %v707
    %v1050 = vpop.f32.mrf.mxu0
    %v1051 = vadd.f32 0.0, %v1050
    %v1052 = vpop.f32.mrf.mxu0
    %v1053 = vadd.f32 0.0, %v1052
    %1054 = vmatprep.mubr.f32.mxu0 0.0
    %1055 = vmatmul.mubr.f32.gmra.mxu0 %v710
    %v1056 = vpop.f32.mrf.mxu0
    %v1057 = vadd.f32 0.0, %v1056
    %v1058 = vpop.f32.mrf.mxu0
    %v1059 = vadd.f32 0.0, %v1058
    %1060 = vmatprep.mubr.f32.mxu0 0.0
    %1061 = vmatmul.mubr.f32.gmra.mxu0 %v713
    %v1062 = vpop.f32.mrf.mxu0
    %v1063 = vadd.f32 0.0, %v1062
    %v1064 = vpop.f32.mrf.mxu0
    %v1065 = vadd.f32 0.0, %v1064
    %1066 = vmatprep.mubr.f32.mxu0 0.0
    %1067 = vmatmul.mubr.f32.gmra.mxu0 %v716
    %v1068 = vpop.f32.mrf.mxu0
    %v1069 = vadd.f32 0.0, %v1068
    %v1070 = vpop.f32.mrf.mxu0
    %v1071 = vadd.f32 0.0, %v1070
    %1072 = vmatprep.mubr.f32.mxu0 0.0
    %1073 = vmatmul.mubr.f32.gmra.mxu0 %v719
    %v1074 = vpop.f32.mrf.mxu0
    %v1075 = vadd.f32 0.0, %v1074
    %v1076 = vpop.f32.mrf.mxu0
    %v1077 = vadd.f32 0.0, %v1076
    %1078 = vmatprep.mubr.f32.mxu0 0.0
    %1079 = vmatmul.mubr.f32.gmra.mxu0 %v722
    %v1080 = vpop.f32.mrf.mxu0
    %v1081 = vadd.f32 0.0, %v1080
    %v1082 = vpop.f32.mrf.mxu0
    %v1083 = vadd.f32 0.0, %v1082
    %1084 = vmatprep.mubr.f32.mxu0 0.0
    %1085 = vmatmul.mubr.f32.gmra.mxu0 %v725
    %v1086 = vpop.f32.mrf.mxu0
    %v1087 = vadd.f32 0.0, %v1086
    %v1088 = vpop.f32.mrf.mxu0
    %v1089 = vadd.f32 0.0, %v1088
    %1090 = vmatprep.mubr.f32.mxu0 0.0
    %1091 = vmatmul.mubr.f32.gmra.mxu0 %v728
    %v1092 = vpop.f32.mrf.mxu0
    %v1093 = vadd.f32 0.0, %v1092
    %v1094 = vpop.f32.mrf.mxu0
    %v1095 = vadd.f32 0.0, %v1094
    %1096 = vmatprep.mubr.f32.mxu0 0.0
    %1097 = vmatmul.mubr.f32.gmra.mxu0 %v731
    %v1098 = vpop.f32.mrf.mxu0
    %v1099 = vadd.f32 0.0, %v1098
    %v1100 = vpop.f32.mrf.mxu0
    %v1101 = vadd.f32 0.0, %v1100
    %1102 = vmatprep.mubr.f32.mxu0 0.0
    %1103 = vmatmul.mubr.f32.gmra.mxu0 %v734
    %v1104 = vpop.f32.mrf.mxu0
    %v1105 = vadd.f32 0.0, %v1104
    %v1106 = vpop.f32.mrf.mxu0
    %v1107 = vadd.f32 0.0, %v1106
    %1108 = vmatprep.mubr.f32.mxu0 0.0
    %1109 = vmatmul.mubr.f32.gmra.mxu0 %v737
    %v1110 = vpop.f32.mrf.mxu0
    %v1111 = vadd.f32 0.0, %v1110
    %v1112 = vpop.f32.mrf.mxu0
    %v1113 = vadd.f32 0.0, %v1112
    %1114 = vmatprep.mubr.f32.mxu0 0.0
    %1115 = vmatmul.mubr.f32.gmra.mxu0 %v740
    %v1116 = vpop.f32.mrf.mxu0
    %v1117 = vadd.f32 0.0, %v1116
    %v1118 = vpop.f32.mrf.mxu0
    %v1119 = vadd.f32 0.0, %v1118
    %1120 = vmatprep.mubr.f32.mxu0 0.0
    %1121 = vmatmul.mubr.f32.gmra.mxu0 %v743
    %v1122 = vpop.f32.mrf.mxu0
    %v1123 = vadd.f32 0.0, %v1122
    %v1124 = vpop.f32.mrf.mxu0
    %v1125 = vadd.f32 0.0, %v1124
    %1126 = vdwg.mxu0
    %v1127 = vmax.f32 %v812, 0.0
    %v1128 = vmax.f32 %v814, 0.0
    %v1129 = vmax.f32 %v1003, 0.0
    %v1130 = vmax.f32 %v1005, 0.0
    %v1131 = vmax.f32 %v818, 0.0
    %v1132 = vmax.f32 %v820, 0.0
    %v1133 = vmax.f32 %v1009, 0.0
    %v1134 = vmax.f32 %v1011, 0.0
    %v1135 = vmax.f32 %v824, 0.0
    %v1136 = vmax.f32 %v826, 0.0
    %v1137 = vmax.f32 %v1015, 0.0
    %v1138 = vmax.f32 %v1017, 0.0
    %v1139 = vmax.f32 %v830, 0.0
    %v1140 = vmax.f32 %v832, 0.0
    %v1141 = vmax.f32 %v1021, 0.0
    %v1142 = vmax.f32 %v1023, 0.0
    %v1143 = vmax.f32 %v836, 0.0
    %v1144 = vmax.f32 %v838, 0.0
    %v1145 = vmax.f32 %v1027, 0.0
    %v1146 = vmax.f32 %v1029, 0.0
    %v1147 = vmax.f32 %v842, 0.0
    %v1148 = vmax.f32 %v844, 0.0
    %v1149 = vmax.f32 %v1033, 0.0
    %v1150 = vmax.f32 %v1035, 0.0
    %v1151 = vmax.f32 %v848, 0.0
    %v1152 = vmax.f32 %v850, 0.0
    %v1153 = vmax.f32 %v1039, 0.0
    %v1154 = vmax.f32 %v1041, 0.0
    %v1155 = vmax.f32 %v854, 0.0
    %v1156 = vmax.f32 %v856, 0.0
    %v1157 = vmax.f32 %v1045, 0.0
    %v1158 = vmax.f32 %v1047, 0.0
    %v1159 = vmax.f32 %v860, 0.0
    %v1160 = vmax.f32 %v862, 0.0
    %v1161 = vmax.f32 %v1051, 0.0
    %v1162 = vmax.f32 %v1053, 0.0
    %v1163 = vmax.f32 %v866, 0.0
    %v1164 = vmax.f32 %v868, 0.0
    %v1165 = vmax.f32 %v1057, 0.0
    %v1166 = vmax.f32 %v1059, 0.0
    %v1167 = vmax.f32 %v872, 0.0
    %v1168 = vmax.f32 %v874, 0.0
    %v1169 = vmax.f32 %v1063, 0.0
    %v1170 = vmax.f32 %v1065, 0.0
    %v1171 = vmax.f32 %v878, 0.0
    %v1172 = vmax.f32 %v880, 0.0
    %v1173 = vmax.f32 %v1069, 0.0
    %v1174 = vmax.f32 %v1071, 0.0
    %v1175 = vmax.f32 %v884, 0.0
    %v1176 = vmax.f32 %v886, 0.0
    %v1177 = vmax.f32 %v1075, 0.0
    %v1178 = vmax.f32 %v1077, 0.0
    %v1179 = vmax.f32 %v890, 0.0
    %v1180 = vmax.f32 %v892, 0.0
    %v1181 = vmax.f32 %v1081, 0.0
    %v1182 = vmax.f32 %v1083, 0.0
    %v1183 = vmax.f32 %v896, 0.0
    %v1184 = vmax.f32 %v898, 0.0
    %v1185 = vmax.f32 %v1087, 0.0
    %v1186 = vmax.f32 %v1089, 0.0
    %v1187 = vmax.f32 %v902, 0.0
    %v1188 = vmax.f32 %v904, 0.0
    %v1189 = vmax.f32 %v1093, 0.0
    %v1190 = vmax.f32 %v1095, 0.0
    %v1191 = vmax.f32 %v908, 0.0
    %v1192 = vmax.f32 %v910, 0.0
    %v1193 = vmax.f32 %v1099, 0.0
    %v1194 = vmax.f32 %v1101, 0.0
    %v1195 = vmax.f32 %v914, 0.0
    %v1196 = vmax.f32 %v916, 0.0
    %v1197 = vmax.f32 %v1105, 0.0
    %v1198 = vmax.f32 %v1107, 0.0
    %v1199 = vmax.f32 %v920, 0.0
    %v1200 = vmax.f32 %v922, 0.0
    %v1201 = vmax.f32 %v1111, 0.0
    %v1202 = vmax.f32 %v1113, 0.0
    %v1203 = vmax.f32 %v926, 0.0
    %v1204 = vmax.f32 %v928, 0.0
    %v1205 = vmax.f32 %v1117, 0.0
    %v1206 = vmax.f32 %v1119, 0.0
    %v1207 = vmax.f32 %v932, 0.0
    %v1208 = vmax.f32 %v934, 0.0
    %v1209 = vmax.f32 %v1123, 0.0
    %v1210 = vmax.f32 %v1125, 0.0
    %s1211 = smul.u32 8, 41
    %s1212 = smul.u32 %s1211, 2
    %s1213 = sshll.u32 %s1212, 4
    %1214 = dma.done [#allocation3], %s1213
    %v1215 = vld [vmem:[#allocation2] sm:$0xff]
    %v1216 = vld [vmem:[#allocation2 + $0x8] sm:$0xff]
    %v1217 = vld [vmem:[#allocation2 + $0x10] sm:$0xff]
    %v1218 = vld [vmem:[#allocation2 + $0x18] sm:$0xff]
    %v1219 = vld [vmem:[#allocation2 + $0x20] sm:$0xff]
    %v1220 = vld [vmem:[#allocation2 + $0x28] sm:$0xff]
    %v1221 = vld [vmem:[#allocation2 + $0x30] sm:$0xff]
    %v1222 = vld [vmem:[#allocation2 + $0x38] sm:$0xff]
    %v1223 = vld [vmem:[#allocation2 + $0x40] sm:$0xff]
    %v1224 = vld [vmem:[#allocation2 + $0x48] sm:$0xff]
    %v1225 = vld [vmem:[#allocation2 + $0x50] sm:$0xff]
    %v1226 = vld [vmem:[#allocation2 + $0x58] sm:$0xff]
    %v1227 = vld [vmem:[#allocation2 + $0x60] sm:$0xff]
    %v1228 = vld [vmem:[#allocation2 + $0x68] sm:$0xff]
    %v1229 = vld [vmem:[#allocation2 + $0x70] sm:$0xff]
    %v1230 = vld [vmem:[#allocation2 + $0x78] sm:$0xff]
    %v1231 = vld [vmem:[#allocation2 + $0x80] sm:$0xff]
    %v1232 = vld [vmem:[#allocation2 + $0x88] sm:$0xff]
    %v1233 = vld [vmem:[#allocation2 + $0x90] sm:$0xff]
    %v1234 = vld [vmem:[#allocation2 + $0x98] sm:$0xff]
    %v1235 = vld [vmem:[#allocation2 + $0xa0] sm:$0xff]
    %v1236 = vld [vmem:[#allocation2 + $0xa8] sm:$0xff]
    %v1237 = vld [vmem:[#allocation2 + $0xb0] sm:$0xff]
    %v1238 = vld [vmem:[#allocation2 + $0xb8] sm:$0xff]
    %v1239 = vld [vmem:[#allocation2 + $0xc0] sm:$0xff]
    %v1240 = vld [vmem:[#allocation2 + $0xc8] sm:$0xff]
    %v1241 = vld [vmem:[#allocation2 + $0xd0] sm:$0xff]
    %v1242 = vld [vmem:[#allocation2 + $0xd8] sm:$0xff]
    %v1243 = vld [vmem:[#allocation2 + $0xe0] sm:$0xff]
    %v1244 = vld [vmem:[#allocation2 + $0xe8] sm:$0xff]
    %v1245 = vld [vmem:[#allocation2 + $0xf0] sm:$0xff]
    %v1246 = vld [vmem:[#allocation2 + $0xf8] sm:$0xff]
    %v1247 = vld [vmem:[#allocation2 + $0x100] sm:$0xff]
    %v1248 = vld [vmem:[#allocation2 + $0x108] sm:$0xff]
    %v1249 = vld [vmem:[#allocation2 + $0x110] sm:$0xff]
    %v1250 = vld [vmem:[#allocation2 + $0x118] sm:$0xff]
    %v1251 = vld [vmem:[#allocation2 + $0x120] sm:$0xff]
    %v1252 = vld [vmem:[#allocation2 + $0x128] sm:$0xff]
    %v1253 = vld [vmem:[#allocation2 + $0x130] sm:$0xff]
    %v1254 = vld [vmem:[#allocation2 + $0x138] sm:$0xff]
    %v1255 = vld [vmem:[#allocation2 + $0x140] sm:$0xff]
    %v1256 = vld [vmem:[#allocation2 + $0x148] sm:$0xff]
    %v1257 = vld [vmem:[#allocation2 + $0x150] sm:$0xff]
    %v1258 = vld [vmem:[#allocation2 + $0x158] sm:$0xff]
    %v1259 = vld [vmem:[#allocation2 + $0x160] sm:$0xff]
    %v1260 = vld [vmem:[#allocation2 + $0x168] sm:$0xff]
    %v1261 = vld [vmem:[#allocation2 + $0x170] sm:$0xff]
    %v1262 = vld [vmem:[#allocation2 + $0x178] sm:$0xff]
    %v1263 = vld [vmem:[#allocation2 + $0x180] sm:$0xff]
    %v1264 = vld [vmem:[#allocation2 + $0x188] sm:$0xff]
    %v1265 = vld [vmem:[#allocation2 + $0x190] sm:$0xff]
    %v1266 = vld [vmem:[#allocation2 + $0x198] sm:$0xff]
    %v1267 = vld [vmem:[#allocation2 + $0x1a0] sm:$0xff]
    %v1268 = vld [vmem:[#allocation2 + $0x1a8] sm:$0xff]
    %v1269 = vld [vmem:[#allocation2 + $0x1b0] sm:$0xff]
    %v1270 = vld [vmem:[#allocation2 + $0x1b8] sm:$0xff]
    %v1271 = vld [vmem:[#allocation2 + $0x1c0] sm:$0xff]
    %v1272 = vld [vmem:[#allocation2 + $0x1c8] sm:$0xff]
    %v1273 = vld [vmem:[#allocation2 + $0x1d0] sm:$0xff]
    %v1274 = vld [vmem:[#allocation2 + $0x1d8] sm:$0xff]
    %v1275 = vld [vmem:[#allocation2 + $0x1e0] sm:$0xff]
    %v1276 = vld [vmem:[#allocation2 + $0x1e8] sm:$0xff]
    %v1277 = vld [vmem:[#allocation2 + $0x1f0] sm:$0xff]
    %v1278 = vld [vmem:[#allocation2 + $0x1f8] sm:$0xff]
    %v1279 = vld [vmem:[#allocation2 + $0x200] sm:$0xff]
    %v1280 = vld [vmem:[#allocation2 + $0x208] sm:$0xff]
    %v1281 = vld [vmem:[#allocation2 + $0x210] sm:$0xff]
    %v1282 = vld [vmem:[#allocation2 + $0x218] sm:$0xff]
    %v1283 = vld [vmem:[#allocation2 + $0x220] sm:$0xff]
    %v1284 = vld [vmem:[#allocation2 + $0x228] sm:$0xff]
    %v1285 = vld [vmem:[#allocation2 + $0x230] sm:$0xff]
    %v1286 = vld [vmem:[#allocation2 + $0x238] sm:$0xff]
    %v1287 = vld [vmem:[#allocation2 + $0x240] sm:$0xff]
    %v1288 = vld [vmem:[#allocation2 + $0x248] sm:$0xff]
    %v1289 = vld [vmem:[#allocation2 + $0x250] sm:$0xff]
    %v1290 = vld [vmem:[#allocation2 + $0x258] sm:$0xff]
    %v1291 = vld [vmem:[#allocation2 + $0x260] sm:$0xff]
    %v1292 = vld [vmem:[#allocation2 + $0x268] sm:$0xff]
    %v1293 = vld [vmem:[#allocation2 + $0x270] sm:$0xff]
    %v1294 = vld [vmem:[#allocation2 + $0x278] sm:$0xff]
    %v1295 = vld [vmem:[#allocation2 + $0x280] sm:$0xff]
    %v1296 = vld [vmem:[#allocation2 + $0x288] sm:$0xff]
    %vm1297 = vcmask 326656
    %v1299 = vsel %vm1297, %v1216, 0
    %v1302 = vsel %vm1297, %v1218, 0
    %v1305 = vsel %vm1297, %v1220, 0
    %v1308 = vsel %vm1297, %v1222, 0
    %v1311 = vsel %vm1297, %v1224, 0
    %v1314 = vsel %vm1297, %v1226, 0
    %v1317 = vsel %vm1297, %v1228, 0
    %v1320 = vsel %vm1297, %v1230, 0
    %v1323 = vsel %vm1297, %v1232, 0
    %v1326 = vsel %vm1297, %v1234, 0
    %v1329 = vsel %vm1297, %v1236, 0
    %v1332 = vsel %vm1297, %v1238, 0
    %v1335 = vsel %vm1297, %v1240, 0
    %v1338 = vsel %vm1297, %v1242, 0
    %v1341 = vsel %vm1297, %v1244, 0
    %v1344 = vsel %vm1297, %v1246, 0
    %v1347 = vsel %vm1297, %v1248, 0
    %v1350 = vsel %vm1297, %v1250, 0
    %v1353 = vsel %vm1297, %v1252, 0
    %v1356 = vsel %vm1297, %v1254, 0
    %v1359 = vsel %vm1297, %v1256, 0
    %v1362 = vsel %vm1297, %v1258, 0
    %v1365 = vsel %vm1297, %v1260, 0
    %v1368 = vsel %vm1297, %v1262, 0
    %v1371 = vsel %vm1297, %v1264, 0
    %v1374 = vsel %vm1297, %v1266, 0
    %v1377 = vsel %vm1297, %v1268, 0
    %v1380 = vsel %vm1297, %v1270, 0
    %v1383 = vsel %vm1297, %v1272, 0
    %v1386 = vsel %vm1297, %v1274, 0
    %v1389 = vsel %vm1297, %v1276, 0
    %v1392 = vsel %vm1297, %v1278, 0
    %v1395 = vsel %vm1297, %v1280, 0
    %v1398 = vsel %vm1297, %v1282, 0
    %v1401 = vsel %vm1297, %v1284, 0
    %v1404 = vsel %vm1297, %v1286, 0
    %v1407 = vsel %vm1297, %v1288, 0
    %v1410 = vsel %vm1297, %v1290, 0
    %v1413 = vsel %vm1297, %v1292, 0
    %v1416 = vsel %vm1297, %v1294, 0
    %v1419 = vsel %vm1297, %v1296, 0
    %1421 = vmatprep.subr.mxu0 %v1188
    %1422 = vmatpush1.msra.mxu0 %v1187
    %1423 = vmatprep.subr.mxu0 %v1184
    %1424 = vmatpush1.msra.mxu0 %v1183
    %1425 = vmatprep.subr.mxu0 %v1180
    %1426 = vmatpush1.msra.mxu0 %v1179
    %1427 = vmatprep.subr.mxu0 %v1176
    %1428 = vmatpush1.msra.mxu0 %v1175
    %1429 = vmatprep.subr.mxu0 %v1172
    %1430 = vmatpush1.msra.mxu0 %v1171
    %1431 = vmatprep.subr.mxu0 %v1168
    %1432 = vmatpush1.msra.mxu0 %v1167
    %1433 = vmatprep.subr.mxu0 %v1164
    %1434 = vmatpush1.msra.mxu0 %v1163
    %1435 = vmatprep.subr.mxu0 %v1160
    %1436 = vmatpush1.msra.mxu0 %v1159
    %1437 = vmatprep.subr.mxu0 %v1156
    %1438 = vmatpush1.msra.mxu0 %v1155
    %1439 = vmatprep.subr.mxu0 %v1152
    %1440 = vmatpush1.msra.mxu0 %v1151
    %1441 = vmatprep.subr.mxu0 %v1148
    %1442 = vmatpush1.msra.mxu0 %v1147
    %1443 = vmatprep.subr.mxu0 %v1144
    %1444 = vmatpush1.msra.mxu0 %v1143
    %1445 = vmatprep.subr.mxu0 %v1140
    %1446 = vmatpush1.msra.mxu0 %v1139
    %1447 = vmatprep.subr.mxu0 %v1136
    %1448 = vmatpush1.msra.mxu0 %v1135
    %1449 = vmatprep.subr.mxu0 %v1132
    %1450 = vmatpush1.msra.mxu0 %v1131
    %1451 = vmatprep.subr.mxu0 %v1128
    %1452 = vmatpush1.msra.mxu0 %v1127
    %1453 = vmatprep.subr.mxu0 0.0
    %1454 = vmatpush2.msra.mxu0 0.0
    %1455 = vmatprep.subr.mxu0 0.0
    %1456 = vmatpush2.msra.mxu0 0.0
    %1457 = vmatprep.subr.mxu0 0.0
    %1458 = vmatpush2.msra.mxu0 0.0
    %1459 = vmatprep.subr.mxu0 0.0
    %1460 = vmatpush2.msra.mxu0 0.0
    %1461 = vmatprep.subr.mxu0 0.0
    %1462 = vmatpush2.msra.mxu0 0.0
    %1463 = vmatprep.subr.mxu0 0.0
    %1464 = vmatpush2.msra.mxu0 0.0
    %1465 = vmatprep.subr.mxu0 0.0
    %1466 = vmatpush2.msra.mxu0 0.0
    %1467 = vmatprep.subr.mxu0 0.0
    %1468 = vmatpush2.msra.mxu0 0.0
    %1469 = vmatprep.subr.mxu0 0.0
    %1470 = vmatpush2.msra.mxu0 0.0
    %1471 = vmatprep.subr.mxu0 0.0
    %1472 = vmatpush2.msra.mxu0 0.0
    %1473 = vmatprep.subr.mxu0 0.0
    %1474 = vmatpush2.msra.mxu0 0.0
    %1475 = vmatprep.subr.mxu0 %v1208
    %1476 = vmatpush2.msra.mxu0 %v1207
    %1477 = vmatprep.subr.mxu0 %v1204
    %1478 = vmatpush2.msra.mxu0 %v1203
    %1479 = vmatprep.subr.mxu0 %v1200
    %1480 = vmatpush2.msra.mxu0 %v1199
    %1481 = vmatprep.subr.mxu0 %v1196
    %1482 = vmatpush2.msra.mxu0 %v1195
    %1483 = vmatprep.subr.mxu0 %v1192
    %1484 = vmatpush2.msra.mxu0 %v1191
    %1485 = vmatprep.mubr.f32.mxu0 %v1299
    %1486 = vmatmul.mubr.f32.gmra.mxu0 %v1215
    %v1487 = vpop.f32.mrf.mxu0
    %v1488 = vadd.f32 0.0, %v1487
    %v1489 = vpop.f32.mrf.mxu0
    %v1490 = vadd.f32 0.0, %v1489
    %1491 = vmatprep.mubr.f32.mxu0 %v1302
    %1492 = vmatmul.mubr.f32.gmra.mxu0 %v1217
    %v1493 = vpop.f32.mrf.mxu0
    %v1494 = vadd.f32 0.0, %v1493
    %v1495 = vpop.f32.mrf.mxu0
    %v1496 = vadd.f32 0.0, %v1495
    %1497 = vmatprep.mubr.f32.mxu0 %v1305
    %1498 = vmatmul.mubr.f32.gmra.mxu0 %v1219
    %v1499 = vpop.f32.mrf.mxu0
    %v1500 = vadd.f32 0.0, %v1499
    %v1501 = vpop.f32.mrf.mxu0
    %v1502 = vadd.f32 0.0, %v1501
    %1503 = vmatprep.mubr.f32.mxu0 %v1308
    %1504 = vmatmul.mubr.f32.gmra.mxu0 %v1221
    %v1505 = vpop.f32.mrf.mxu0
    %v1506 = vadd.f32 0.0, %v1505
    %v1507 = vpop.f32.mrf.mxu0
    %v1508 = vadd.f32 0.0, %v1507
    %1509 = vmatprep.mubr.f32.mxu0 %v1311
    %1510 = vmatmul.mubr.f32.gmra.mxu0 %v1223
    %v1511 = vpop.f32.mrf.mxu0
    %v1512 = vadd.f32 0.0, %v1511
    %v1513 = vpop.f32.mrf.mxu0
    %v1514 = vadd.f32 0.0, %v1513
    %1515 = vmatprep.mubr.f32.mxu0 %v1314
    %1516 = vmatmul.mubr.f32.gmra.mxu0 %v1225
    %v1517 = vpop.f32.mrf.mxu0
    %v1518 = vadd.f32 0.0, %v1517
    %v1519 = vpop.f32.mrf.mxu0
    %v1520 = vadd.f32 0.0, %v1519
    %1521 = vmatprep.mubr.f32.mxu0 %v1317
    %1522 = vmatmul.mubr.f32.gmra.mxu0 %v1227
    %v1523 = vpop.f32.mrf.mxu0
    %v1524 = vadd.f32 0.0, %v1523
    %v1525 = vpop.f32.mrf.mxu0
    %v1526 = vadd.f32 0.0, %v1525
    %1527 = vmatprep.mubr.f32.mxu0 %v1320
    %1528 = vmatmul.mubr.f32.gmra.mxu0 %v1229
    %v1529 = vpop.f32.mrf.mxu0
    %v1530 = vadd.f32 0.0, %v1529
    %v1531 = vpop.f32.mrf.mxu0
    %v1532 = vadd.f32 0.0, %v1531
    %1533 = vmatprep.mubr.f32.mxu0 %v1323
    %1534 = vmatmul.mubr.f32.gmra.mxu0 %v1231
    %v1535 = vpop.f32.mrf.mxu0
    %v1536 = vadd.f32 0.0, %v1535
    %v1537 = vpop.f32.mrf.mxu0
    %v1538 = vadd.f32 0.0, %v1537
    %1539 = vmatprep.mubr.f32.mxu0 %v1326
    %1540 = vmatmul.mubr.f32.gmra.mxu0 %v1233
    %v1541 = vpop.f32.mrf.mxu0
    %v1542 = vadd.f32 0.0, %v1541
    %v1543 = vpop.f32.mrf.mxu0
    %v1544 = vadd.f32 0.0, %v1543
    %1545 = vmatprep.mubr.f32.mxu0 %v1329
    %1546 = vmatmul.mubr.f32.gmra.mxu0 %v1235
    %v1547 = vpop.f32.mrf.mxu0
    %v1548 = vadd.f32 0.0, %v1547
    %v1549 = vpop.f32.mrf.mxu0
    %v1550 = vadd.f32 0.0, %v1549
    %1551 = vmatprep.mubr.f32.mxu0 %v1332
    %1552 = vmatmul.mubr.f32.gmra.mxu0 %v1237
    %v1553 = vpop.f32.mrf.mxu0
    %v1554 = vadd.f32 0.0, %v1553
    %v1555 = vpop.f32.mrf.mxu0
    %v1556 = vadd.f32 0.0, %v1555
    %1557 = vmatprep.mubr.f32.mxu0 %v1335
    %1558 = vmatmul.mubr.f32.gmra.mxu0 %v1239
    %v1559 = vpop.f32.mrf.mxu0
    %v1560 = vadd.f32 0.0, %v1559
    %v1561 = vpop.f32.mrf.mxu0
    %v1562 = vadd.f32 0.0, %v1561
    %1563 = vmatprep.mubr.f32.mxu0 %v1338
    %1564 = vmatmul.mubr.f32.gmra.mxu0 %v1241
    %v1565 = vpop.f32.mrf.mxu0
    %v1566 = vadd.f32 0.0, %v1565
    %v1567 = vpop.f32.mrf.mxu0
    %v1568 = vadd.f32 0.0, %v1567
    %1569 = vmatprep.mubr.f32.mxu0 %v1341
    %1570 = vmatmul.mubr.f32.gmra.mxu0 %v1243
    %v1571 = vpop.f32.mrf.mxu0
    %v1572 = vadd.f32 0.0, %v1571
    %v1573 = vpop.f32.mrf.mxu0
    %v1574 = vadd.f32 0.0, %v1573
    %1575 = vmatprep.mubr.f32.mxu0 %v1344
    %1576 = vmatmul.mubr.f32.gmra.mxu0 %v1245
    %v1577 = vpop.f32.mrf.mxu0
    %v1578 = vadd.f32 0.0, %v1577
    %v1579 = vpop.f32.mrf.mxu0
    %v1580 = vadd.f32 0.0, %v1579
    %1581 = vmatprep.mubr.f32.mxu0 %v1347
    %1582 = vmatmul.mubr.f32.gmra.mxu0 %v1247
    %v1583 = vpop.f32.mrf.mxu0
    %v1584 = vadd.f32 0.0, %v1583
    %v1585 = vpop.f32.mrf.mxu0
    %v1586 = vadd.f32 0.0, %v1585
    %1587 = vmatprep.mubr.f32.mxu0 %v1350
    %1588 = vmatmul.mubr.f32.gmra.mxu0 %v1249
    %v1589 = vpop.f32.mrf.mxu0
    %v1590 = vadd.f32 0.0, %v1589
    %v1591 = vpop.f32.mrf.mxu0
    %v1592 = vadd.f32 0.0, %v1591
    %1593 = vmatprep.mubr.f32.mxu0 %v1353
    %1594 = vmatmul.mubr.f32.gmra.mxu0 %v1251
    %v1595 = vpop.f32.mrf.mxu0
    %v1596 = vadd.f32 0.0, %v1595
    %v1597 = vpop.f32.mrf.mxu0
    %v1598 = vadd.f32 0.0, %v1597
    %1599 = vmatprep.mubr.f32.mxu0 %v1356
    %1600 = vmatmul.mubr.f32.gmra.mxu0 %v1253
    %v1601 = vpop.f32.mrf.mxu0
    %v1602 = vadd.f32 0.0, %v1601
    %v1603 = vpop.f32.mrf.mxu0
    %v1604 = vadd.f32 0.0, %v1603
    %1605 = vmatprep.mubr.f32.mxu0 %v1359
    %1606 = vmatmul.mubr.f32.gmra.mxu0 %v1255
    %v1607 = vpop.f32.mrf.mxu0
    %v1608 = vadd.f32 0.0, %v1607
    %v1609 = vpop.f32.mrf.mxu0
    %v1610 = vadd.f32 0.0, %v1609
    %1611 = vmatprep.mubr.f32.mxu0 %v1362
    %1612 = vmatmul.mubr.f32.gmra.mxu0 %v1257
    %v1613 = vpop.f32.mrf.mxu0
    %v1614 = vadd.f32 0.0, %v1613
    %v1615 = vpop.f32.mrf.mxu0
    %v1616 = vadd.f32 0.0, %v1615
    %1617 = vmatprep.mubr.f32.mxu0 %v1365
    %1618 = vmatmul.mubr.f32.gmra.mxu0 %v1259
    %v1619 = vpop.f32.mrf.mxu0
    %v1620 = vadd.f32 0.0, %v1619
    %v1621 = vpop.f32.mrf.mxu0
    %v1622 = vadd.f32 0.0, %v1621
    %1623 = vmatprep.mubr.f32.mxu0 %v1368
    %1624 = vmatmul.mubr.f32.gmra.mxu0 %v1261
    %v1625 = vpop.f32.mrf.mxu0
    %v1626 = vadd.f32 0.0, %v1625
    %v1627 = vpop.f32.mrf.mxu0
    %v1628 = vadd.f32 0.0, %v1627
    %1629 = vmatprep.mubr.f32.mxu0 %v1371
    %1630 = vmatmul.mubr.f32.gmra.mxu0 %v1263
    %v1631 = vpop.f32.mrf.mxu0
    %v1632 = vadd.f32 0.0, %v1631
    %v1633 = vpop.f32.mrf.mxu0
    %v1634 = vadd.f32 0.0, %v1633
    %1635 = vmatprep.mubr.f32.mxu0 %v1374
    %1636 = vmatmul.mubr.f32.gmra.mxu0 %v1265
    %v1637 = vpop.f32.mrf.mxu0
    %v1638 = vadd.f32 0.0, %v1637
    %v1639 = vpop.f32.mrf.mxu0
    %v1640 = vadd.f32 0.0, %v1639
    %1641 = vmatprep.mubr.f32.mxu0 %v1377
    %1642 = vmatmul.mubr.f32.gmra.mxu0 %v1267
    %v1643 = vpop.f32.mrf.mxu0
    %v1644 = vadd.f32 0.0, %v1643
    %v1645 = vpop.f32.mrf.mxu0
    %v1646 = vadd.f32 0.0, %v1645
    %1647 = vmatprep.mubr.f32.mxu0 %v1380
    %1648 = vmatmul.mubr.f32.gmra.mxu0 %v1269
    %v1649 = vpop.f32.mrf.mxu0
    %v1650 = vadd.f32 0.0, %v1649
    %v1651 = vpop.f32.mrf.mxu0
    %v1652 = vadd.f32 0.0, %v1651
    %1653 = vmatprep.mubr.f32.mxu0 %v1383
    %1654 = vmatmul.mubr.f32.gmra.mxu0 %v1271
    %v1655 = vpop.f32.mrf.mxu0
    %v1656 = vadd.f32 0.0, %v1655
    %v1657 = vpop.f32.mrf.mxu0
    %v1658 = vadd.f32 0.0, %v1657
    %1659 = vmatprep.mubr.f32.mxu0 %v1386
    %1660 = vmatmul.mubr.f32.gmra.mxu0 %v1273
    %v1661 = vpop.f32.mrf.mxu0
    %v1662 = vadd.f32 0.0, %v1661
    %v1663 = vpop.f32.mrf.mxu0
    %v1664 = vadd.f32 0.0, %v1663
    %1665 = vmatprep.mubr.f32.mxu0 %v1389
    %1666 = vmatmul.mubr.f32.gmra.mxu0 %v1275
    %v1667 = vpop.f32.mrf.mxu0
    %v1668 = vadd.f32 0.0, %v1667
    %v1669 = vpop.f32.mrf.mxu0
    %v1670 = vadd.f32 0.0, %v1669
    %1671 = vmatprep.mubr.f32.mxu0 %v1392
    %1672 = vmatmul.mubr.f32.gmra.mxu0 %v1277
    %v1673 = vpop.f32.mrf.mxu0
    %v1674 = vadd.f32 0.0, %v1673
    %v1675 = vpop.f32.mrf.mxu0
    %v1676 = vadd.f32 0.0, %v1675
    %1677 = vmatprep.mubr.f32.mxu0 %v1395
    %1678 = vmatmul.mubr.f32.gmra.mxu0 %v1279
    %v1679 = vpop.f32.mrf.mxu0
    %v1680 = vadd.f32 0.0, %v1679
    %v1681 = vpop.f32.mrf.mxu0
    %v1682 = vadd.f32 0.0, %v1681
    %1683 = vmatprep.mubr.f32.mxu0 %v1398
    %1684 = vmatmul.mubr.f32.gmra.mxu0 %v1281
    %v1685 = vpop.f32.mrf.mxu0
    %v1686 = vadd.f32 0.0, %v1685
    %v1687 = vpop.f32.mrf.mxu0
    %v1688 = vadd.f32 0.0, %v1687
    %1689 = vmatprep.mubr.f32.mxu0 %v1401
    %1690 = vmatmul.mubr.f32.gmra.mxu0 %v1283
    %v1691 = vpop.f32.mrf.mxu0
    %v1692 = vadd.f32 0.0, %v1691
    %v1693 = vpop.f32.mrf.mxu0
    %v1694 = vadd.f32 0.0, %v1693
    %1695 = vmatprep.mubr.f32.mxu0 %v1404
    %1696 = vmatmul.mubr.f32.gmra.mxu0 %v1285
    %v1697 = vpop.f32.mrf.mxu0
    %v1698 = vadd.f32 0.0, %v1697
    %v1699 = vpop.f32.mrf.mxu0
    %v1700 = vadd.f32 0.0, %v1699
    %1701 = vmatprep.mubr.f32.mxu0 %v1407
    %1702 = vmatmul.mubr.f32.gmra.mxu0 %v1287
    %v1703 = vpop.f32.mrf.mxu0
    %v1704 = vadd.f32 0.0, %v1703
    %v1705 = vpop.f32.mrf.mxu0
    %v1706 = vadd.f32 0.0, %v1705
    %1707 = vmatprep.mubr.f32.mxu0 %v1410
    %1708 = vmatmul.mubr.f32.gmra.mxu0 %v1289
    %v1709 = vpop.f32.mrf.mxu0
    %v1710 = vadd.f32 0.0, %v1709
    %v1711 = vpop.f32.mrf.mxu0
    %v1712 = vadd.f32 0.0, %v1711
    %1713 = vmatprep.mubr.f32.mxu0 %v1413
    %1714 = vmatmul.mubr.f32.gmra.mxu0 %v1291
    %v1715 = vpop.f32.mrf.mxu0
    %v1716 = vadd.f32 0.0, %v1715
    %v1717 = vpop.f32.mrf.mxu0
    %v1718 = vadd.f32 0.0, %v1717
    %1719 = vmatprep.mubr.f32.mxu0 %v1416
    %1720 = vmatmul.mubr.f32.gmra.mxu0 %v1293
    %v1721 = vpop.f32.mrf.mxu0
    %v1722 = vadd.f32 0.0, %v1721
    %v1723 = vpop.f32.mrf.mxu0
    %v1724 = vadd.f32 0.0, %v1723
    %1725 = vmatprep.mubr.f32.mxu0 %v1419
    %1726 = vmatmul.mubr.f32.gmra.mxu0 %v1295
    %v1727 = vpop.f32.mrf.mxu0
    %v1728 = vadd.f32 0.0, %v1727
    %v1729 = vpop.f32.mrf.mxu0
    %v1730 = vadd.f32 0.0, %v1729
    %1731 = vdwg.mxu0
    %1732 = vmatprep.subr.mxu0 %v1190
    %1733 = vmatpush1.msra.mxu0 %v1189
    %1734 = vmatprep.subr.mxu0 %v1186
    %1735 = vmatpush1.msra.mxu0 %v1185
    %1736 = vmatprep.subr.mxu0 %v1182
    %1737 = vmatpush1.msra.mxu0 %v1181
    %1738 = vmatprep.subr.mxu0 %v1178
    %1739 = vmatpush1.msra.mxu0 %v1177
    %1740 = vmatprep.subr.mxu0 %v1174
    %1741 = vmatpush1.msra.mxu0 %v1173
    %1742 = vmatprep.subr.mxu0 %v1170
    %1743 = vmatpush1.msra.mxu0 %v1169
    %1744 = vmatprep.subr.mxu0 %v1166
    %1745 = vmatpush1.msra.mxu0 %v1165
    %1746 = vmatprep.subr.mxu0 %v1162
    %1747 = vmatpush1.msra.mxu0 %v1161
    %1748 = vmatprep.subr.mxu0 %v1158
    %1749 = vmatpush1.msra.mxu0 %v1157
    %1750 = vmatprep.subr.mxu0 %v1154
    %1751 = vmatpush1.msra.mxu0 %v1153
    %1752 = vmatprep.subr.mxu0 %v1150
    %1753 = vmatpush1.msra.mxu0 %v1149
    %1754 = vmatprep.subr.mxu0 %v1146
    %1755 = vmatpush1.msra.mxu0 %v1145
    %1756 = vmatprep.subr.mxu0 %v1142
    %1757 = vmatpush1.msra.mxu0 %v1141
    %1758 = vmatprep.subr.mxu0 %v1138
    %1759 = vmatpush1.msra.mxu0 %v1137
    %1760 = vmatprep.subr.mxu0 %v1134
    %1761 = vmatpush1.msra.mxu0 %v1133
    %1762 = vmatprep.subr.mxu0 %v1130
    %1763 = vmatpush1.msra.mxu0 %v1129
    %1764 = vmatprep.subr.mxu0 0.0
    %1765 = vmatpush2.msra.mxu0 0.0
    %1766 = vmatprep.subr.mxu0 0.0
    %1767 = vmatpush2.msra.mxu0 0.0
    %1768 = vmatprep.subr.mxu0 0.0
    %1769 = vmatpush2.msra.mxu0 0.0
    %1770 = vmatprep.subr.mxu0 0.0
    %1771 = vmatpush2.msra.mxu0 0.0
    %1772 = vmatprep.subr.mxu0 0.0
    %1773 = vmatpush2.msra.mxu0 0.0
    %1774 = vmatprep.subr.mxu0 0.0
    %1775 = vmatpush2.msra.mxu0 0.0
    %1776 = vmatprep.subr.mxu0 0.0
    %1777 = vmatpush2.msra.mxu0 0.0
    %1778 = vmatprep.subr.mxu0 0.0
    %1779 = vmatpush2.msra.mxu0 0.0
    %1780 = vmatprep.subr.mxu0 0.0
    %1781 = vmatpush2.msra.mxu0 0.0
    %1782 = vmatprep.subr.mxu0 0.0
    %1783 = vmatpush2.msra.mxu0 0.0
    %1784 = vmatprep.subr.mxu0 0.0
    %1785 = vmatpush2.msra.mxu0 0.0
    %1786 = vmatprep.subr.mxu0 %v1210
    %1787 = vmatpush2.msra.mxu0 %v1209
    %1788 = vmatprep.subr.mxu0 %v1206
    %1789 = vmatpush2.msra.mxu0 %v1205
    %1790 = vmatprep.subr.mxu0 %v1202
    %1791 = vmatpush2.msra.mxu0 %v1201
    %1792 = vmatprep.subr.mxu0 %v1198
    %1793 = vmatpush2.msra.mxu0 %v1197
    %1794 = vmatprep.subr.mxu0 %v1194
    %1795 = vmatpush2.msra.mxu0 %v1193
    %1796 = vmatprep.mubr.f32.mxu0 %v1299
    %1797 = vmatmul.mubr.f32.gmra.mxu0 %v1215
    %v1798 = vpop.f32.mrf.mxu0
    %v1799 = vadd.f32 0.0, %v1798
    %v1800 = vpop.f32.mrf.mxu0
    %v1801 = vadd.f32 0.0, %v1800
    %1802 = vmatprep.mubr.f32.mxu0 %v1302
    %1803 = vmatmul.mubr.f32.gmra.mxu0 %v1217
    %v1804 = vpop.f32.mrf.mxu0
    %v1805 = vadd.f32 0.0, %v1804
    %v1806 = vpop.f32.mrf.mxu0
    %v1807 = vadd.f32 0.0, %v1806
    %1808 = vmatprep.mubr.f32.mxu0 %v1305
    %1809 = vmatmul.mubr.f32.gmra.mxu0 %v1219
    %v1810 = vpop.f32.mrf.mxu0
    %v1811 = vadd.f32 0.0, %v1810
    %v1812 = vpop.f32.mrf.mxu0
    %v1813 = vadd.f32 0.0, %v1812
    %1814 = vmatprep.mubr.f32.mxu0 %v1308
    %1815 = vmatmul.mubr.f32.gmra.mxu0 %v1221
    %v1816 = vpop.f32.mrf.mxu0
    %v1817 = vadd.f32 0.0, %v1816
    %v1818 = vpop.f32.mrf.mxu0
    %v1819 = vadd.f32 0.0, %v1818
    %1820 = vmatprep.mubr.f32.mxu0 %v1311
    %1821 = vmatmul.mubr.f32.gmra.mxu0 %v1223
    %v1822 = vpop.f32.mrf.mxu0
    %v1823 = vadd.f32 0.0, %v1822
    %v1824 = vpop.f32.mrf.mxu0
    %v1825 = vadd.f32 0.0, %v1824
    %1826 = vmatprep.mubr.f32.mxu0 %v1314
    %1827 = vmatmul.mubr.f32.gmra.mxu0 %v1225
    %v1828 = vpop.f32.mrf.mxu0
    %v1829 = vadd.f32 0.0, %v1828
    %v1830 = vpop.f32.mrf.mxu0
    %v1831 = vadd.f32 0.0, %v1830
    %1832 = vmatprep.mubr.f32.mxu0 %v1317
    %1833 = vmatmul.mubr.f32.gmra.mxu0 %v1227
    %v1834 = vpop.f32.mrf.mxu0
    %v1835 = vadd.f32 0.0, %v1834
    %v1836 = vpop.f32.mrf.mxu0
    %v1837 = vadd.f32 0.0, %v1836
    %1838 = vmatprep.mubr.f32.mxu0 %v1320
    %1839 = vmatmul.mubr.f32.gmra.mxu0 %v1229
    %v1840 = vpop.f32.mrf.mxu0
    %v1841 = vadd.f32 0.0, %v1840
    %v1842 = vpop.f32.mrf.mxu0
    %v1843 = vadd.f32 0.0, %v1842
    %1844 = vmatprep.mubr.f32.mxu0 %v1323
    %1845 = vmatmul.mubr.f32.gmra.mxu0 %v1231
    %v1846 = vpop.f32.mrf.mxu0
    %v1847 = vadd.f32 0.0, %v1846
    %v1848 = vpop.f32.mrf.mxu0
    %v1849 = vadd.f32 0.0, %v1848
    %1850 = vmatprep.mubr.f32.mxu0 %v1326
    %1851 = vmatmul.mubr.f32.gmra.mxu0 %v1233
    %v1852 = vpop.f32.mrf.mxu0
    %v1853 = vadd.f32 0.0, %v1852
    %v1854 = vpop.f32.mrf.mxu0
    %v1855 = vadd.f32 0.0, %v1854
    %1856 = vmatprep.mubr.f32.mxu0 %v1329
    %1857 = vmatmul.mubr.f32.gmra.mxu0 %v1235
    %v1858 = vpop.f32.mrf.mxu0
    %v1859 = vadd.f32 0.0, %v1858
    %v1860 = vpop.f32.mrf.mxu0
    %v1861 = vadd.f32 0.0, %v1860
    %1862 = vmatprep.mubr.f32.mxu0 %v1332
    %1863 = vmatmul.mubr.f32.gmra.mxu0 %v1237
    %v1864 = vpop.f32.mrf.mxu0
    %v1865 = vadd.f32 0.0, %v1864
    %v1866 = vpop.f32.mrf.mxu0
    %v1867 = vadd.f32 0.0, %v1866
    %1868 = vmatprep.mubr.f32.mxu0 %v1335
    %1869 = vmatmul.mubr.f32.gmra.mxu0 %v1239
    %v1870 = vpop.f32.mrf.mxu0
    %v1871 = vadd.f32 0.0, %v1870
    %v1872 = vpop.f32.mrf.mxu0
    %v1873 = vadd.f32 0.0, %v1872
    %1874 = vmatprep.mubr.f32.mxu0 %v1338
    %1875 = vmatmul.mubr.f32.gmra.mxu0 %v1241
    %v1876 = vpop.f32.mrf.mxu0
    %v1877 = vadd.f32 0.0, %v1876
    %v1878 = vpop.f32.mrf.mxu0
    %v1879 = vadd.f32 0.0, %v1878
    %1880 = vmatprep.mubr.f32.mxu0 %v1341
    %1881 = vmatmul.mubr.f32.gmra.mxu0 %v1243
    %v1882 = vpop.f32.mrf.mxu0
    %v1883 = vadd.f32 0.0, %v1882
    %v1884 = vpop.f32.mrf.mxu0
    %v1885 = vadd.f32 0.0, %v1884
    %1886 = vmatprep.mubr.f32.mxu0 %v1344
    %1887 = vmatmul.mubr.f32.gmra.mxu0 %v1245
    %v1888 = vpop.f32.mrf.mxu0
    %v1889 = vadd.f32 0.0, %v1888
    %v1890 = vpop.f32.mrf.mxu0
    %v1891 = vadd.f32 0.0, %v1890
    %1892 = vmatprep.mubr.f32.mxu0 %v1347
    %1893 = vmatmul.mubr.f32.gmra.mxu0 %v1247
    %v1894 = vpop.f32.mrf.mxu0
    %v1895 = vadd.f32 0.0, %v1894
    %v1896 = vpop.f32.mrf.mxu0
    %v1897 = vadd.f32 0.0, %v1896
    %1898 = vmatprep.mubr.f32.mxu0 %v1350
    %1899 = vmatmul.mubr.f32.gmra.mxu0 %v1249
    %v1900 = vpop.f32.mrf.mxu0
    %v1901 = vadd.f32 0.0, %v1900
    %v1902 = vpop.f32.mrf.mxu0
    %v1903 = vadd.f32 0.0, %v1902
    %1904 = vmatprep.mubr.f32.mxu0 %v1353
    %1905 = vmatmul.mubr.f32.gmra.mxu0 %v1251
    %v1906 = vpop.f32.mrf.mxu0
    %v1907 = vadd.f32 0.0, %v1906
    %v1908 = vpop.f32.mrf.mxu0
    %v1909 = vadd.f32 0.0, %v1908
    %1910 = vmatprep.mubr.f32.mxu0 %v1356
    %1911 = vmatmul.mubr.f32.gmra.mxu0 %v1253
    %v1912 = vpop.f32.mrf.mxu0
    %v1913 = vadd.f32 0.0, %v1912
    %v1914 = vpop.f32.mrf.mxu0
    %v1915 = vadd.f32 0.0, %v1914
    %1916 = vmatprep.mubr.f32.mxu0 %v1359
    %1917 = vmatmul.mubr.f32.gmra.mxu0 %v1255
    %v1918 = vpop.f32.mrf.mxu0
    %v1919 = vadd.f32 0.0, %v1918
    %v1920 = vpop.f32.mrf.mxu0
    %v1921 = vadd.f32 0.0, %v1920
    %1922 = vmatprep.mubr.f32.mxu0 %v1362
    %1923 = vmatmul.mubr.f32.gmra.mxu0 %v1257
    %v1924 = vpop.f32.mrf.mxu0
    %v1925 = vadd.f32 0.0, %v1924
    %v1926 = vpop.f32.mrf.mxu0
    %v1927 = vadd.f32 0.0, %v1926
    %1928 = vmatprep.mubr.f32.mxu0 %v1365
    %1929 = vmatmul.mubr.f32.gmra.mxu0 %v1259
    %v1930 = vpop.f32.mrf.mxu0
    %v1931 = vadd.f32 0.0, %v1930
    %v1932 = vpop.f32.mrf.mxu0
    %v1933 = vadd.f32 0.0, %v1932
    %1934 = vmatprep.mubr.f32.mxu0 %v1368
    %1935 = vmatmul.mubr.f32.gmra.mxu0 %v1261
    %v1936 = vpop.f32.mrf.mxu0
    %v1937 = vadd.f32 0.0, %v1936
    %v1938 = vpop.f32.mrf.mxu0
    %v1939 = vadd.f32 0.0, %v1938
    %1940 = vmatprep.mubr.f32.mxu0 %v1371
    %1941 = vmatmul.mubr.f32.gmra.mxu0 %v1263
    %v1942 = vpop.f32.mrf.mxu0
    %v1943 = vadd.f32 0.0, %v1942
    %v1944 = vpop.f32.mrf.mxu0
    %v1945 = vadd.f32 0.0, %v1944
    %1946 = vmatprep.mubr.f32.mxu0 %v1374
    %1947 = vmatmul.mubr.f32.gmra.mxu0 %v1265
    %v1948 = vpop.f32.mrf.mxu0
    %v1949 = vadd.f32 0.0, %v1948
    %v1950 = vpop.f32.mrf.mxu0
    %v1951 = vadd.f32 0.0, %v1950
    %1952 = vmatprep.mubr.f32.mxu0 %v1377
    %1953 = vmatmul.mubr.f32.gmra.mxu0 %v1267
    %v1954 = vpop.f32.mrf.mxu0
    %v1955 = vadd.f32 0.0, %v1954
    %v1956 = vpop.f32.mrf.mxu0
    %v1957 = vadd.f32 0.0, %v1956
    %1958 = vmatprep.mubr.f32.mxu0 %v1380
    %1959 = vmatmul.mubr.f32.gmra.mxu0 %v1269
    %v1960 = vpop.f32.mrf.mxu0
    %v1961 = vadd.f32 0.0, %v1960
    %v1962 = vpop.f32.mrf.mxu0
    %v1963 = vadd.f32 0.0, %v1962
    %1964 = vmatprep.mubr.f32.mxu0 %v1383
    %1965 = vmatmul.mubr.f32.gmra.mxu0 %v1271
    %v1966 = vpop.f32.mrf.mxu0
    %v1967 = vadd.f32 0.0, %v1966
    %v1968 = vpop.f32.mrf.mxu0
    %v1969 = vadd.f32 0.0, %v1968
    %1970 = vmatprep.mubr.f32.mxu0 %v1386
    %1971 = vmatmul.mubr.f32.gmra.mxu0 %v1273
    %v1972 = vpop.f32.mrf.mxu0
    %v1973 = vadd.f32 0.0, %v1972
    %v1974 = vpop.f32.mrf.mxu0
    %v1975 = vadd.f32 0.0, %v1974
    %1976 = vmatprep.mubr.f32.mxu0 %v1389
    %1977 = vmatmul.mubr.f32.gmra.mxu0 %v1275
    %v1978 = vpop.f32.mrf.mxu0
    %v1979 = vadd.f32 0.0, %v1978
    %v1980 = vpop.f32.mrf.mxu0
    %v1981 = vadd.f32 0.0, %v1980
    %1982 = vmatprep.mubr.f32.mxu0 %v1392
    %1983 = vmatmul.mubr.f32.gmra.mxu0 %v1277
    %v1984 = vpop.f32.mrf.mxu0
    %v1985 = vadd.f32 0.0, %v1984
    %v1986 = vpop.f32.mrf.mxu0
    %v1987 = vadd.f32 0.0, %v1986
    %1988 = vmatprep.mubr.f32.mxu0 %v1395
    %1989 = vmatmul.mubr.f32.gmra.mxu0 %v1279
    %v1990 = vpop.f32.mrf.mxu0
    %v1991 = vadd.f32 0.0, %v1990
    %v1992 = vpop.f32.mrf.mxu0
    %v1993 = vadd.f32 0.0, %v1992
    %1994 = vmatprep.mubr.f32.mxu0 %v1398
    %1995 = vmatmul.mubr.f32.gmra.mxu0 %v1281
    %v1996 = vpop.f32.mrf.mxu0
    %v1997 = vadd.f32 0.0, %v1996
    %v1998 = vpop.f32.mrf.mxu0
    %v1999 = vadd.f32 0.0, %v1998
    %2000 = vmatprep.mubr.f32.mxu0 %v1401
    %2001 = vmatmul.mubr.f32.gmra.mxu0 %v1283
    %v2002 = vpop.f32.mrf.mxu0
    %v2003 = vadd.f32 0.0, %v2002
    %v2004 = vpop.f32.mrf.mxu0
    %v2005 = vadd.f32 0.0, %v2004
    %2006 = vmatprep.mubr.f32.mxu0 %v1404
    %2007 = vmatmul.mubr.f32.gmra.mxu0 %v1285
    %v2008 = vpop.f32.mrf.mxu0
    %v2009 = vadd.f32 0.0, %v2008
    %v2010 = vpop.f32.mrf.mxu0
    %v2011 = vadd.f32 0.0, %v2010
    %2012 = vmatprep.mubr.f32.mxu0 %v1407
    %2013 = vmatmul.mubr.f32.gmra.mxu0 %v1287
    %v2014 = vpop.f32.mrf.mxu0
    %v2015 = vadd.f32 0.0, %v2014
    %v2016 = vpop.f32.mrf.mxu0
    %v2017 = vadd.f32 0.0, %v2016
    %2018 = vmatprep.mubr.f32.mxu0 %v1410
    %2019 = vmatmul.mubr.f32.gmra.mxu0 %v1289
    %v2020 = vpop.f32.mrf.mxu0
    %v2021 = vadd.f32 0.0, %v2020
    %v2022 = vpop.f32.mrf.mxu0
    %v2023 = vadd.f32 0.0, %v2022
    %2024 = vmatprep.mubr.f32.mxu0 %v1413
    %2025 = vmatmul.mubr.f32.gmra.mxu0 %v1291
    %v2026 = vpop.f32.mrf.mxu0
    %v2027 = vadd.f32 0.0, %v2026
    %v2028 = vpop.f32.mrf.mxu0
    %v2029 = vadd.f32 0.0, %v2028
    %2030 = vmatprep.mubr.f32.mxu0 %v1416
    %2031 = vmatmul.mubr.f32.gmra.mxu0 %v1293
    %v2032 = vpop.f32.mrf.mxu0
    %v2033 = vadd.f32 0.0, %v2032
    %v2034 = vpop.f32.mrf.mxu0
    %v2035 = vadd.f32 0.0, %v2034
    %2036 = vmatprep.mubr.f32.mxu0 %v1419
    %2037 = vmatmul.mubr.f32.gmra.mxu0 %v1295
    %v2038 = vpop.f32.mrf.mxu0
    %v2039 = vadd.f32 0.0, %v2038
    %v2040 = vpop.f32.mrf.mxu0
    %v2041 = vadd.f32 0.0, %v2040
    %2042 = vdwg.mxu0
    %v2043 = vmax.f32 %v1488, 0.0
    %v2044 = vmax.f32 %v1490, 0.0
    %v2045 = vmax.f32 %v1799, 0.0
    %v2046 = vmax.f32 %v1801, 0.0
    %v2047 = vmax.f32 %v1494, 0.0
    %v2048 = vmax.f32 %v1496, 0.0
    %v2049 = vmax.f32 %v1805, 0.0
    %v2050 = vmax.f32 %v1807, 0.0
    %v2051 = vmax.f32 %v1500, 0.0
    %v2052 = vmax.f32 %v1502, 0.0
    %v2053 = vmax.f32 %v1811, 0.0
    %v2054 = vmax.f32 %v1813, 0.0
    %v2055 = vmax.f32 %v1506, 0.0
    %v2056 = vmax.f32 %v1508, 0.0
    %v2057 = vmax.f32 %v1817, 0.0
    %v2058 = vmax.f32 %v1819, 0.0
    %v2059 = vmax.f32 %v1512, 0.0
    %v2060 = vmax.f32 %v1514, 0.0
    %v2061 = vmax.f32 %v1823, 0.0
    %v2062 = vmax.f32 %v1825, 0.0
    %v2063 = vmax.f32 %v1518, 0.0
    %v2064 = vmax.f32 %v1520, 0.0
    %v2065 = vmax.f32 %v1829, 0.0
    %v2066 = vmax.f32 %v1831, 0.0
    %v2067 = vmax.f32 %v1524, 0.0
    %v2068 = vmax.f32 %v1526, 0.0
    %v2069 = vmax.f32 %v1835, 0.0
    %v2070 = vmax.f32 %v1837, 0.0
    %v2071 = vmax.f32 %v1530, 0.0
    %v2072 = vmax.f32 %v1532, 0.0
    %v2073 = vmax.f32 %v1841, 0.0
    %v2074 = vmax.f32 %v1843, 0.0
    %v2075 = vmax.f32 %v1536, 0.0
    %v2076 = vmax.f32 %v1538, 0.0
    %v2077 = vmax.f32 %v1847, 0.0
    %v2078 = vmax.f32 %v1849, 0.0
    %v2079 = vmax.f32 %v1542, 0.0
    %v2080 = vmax.f32 %v1544, 0.0
    %v2081 = vmax.f32 %v1853, 0.0
    %v2082 = vmax.f32 %v1855, 0.0
    %v2083 = vmax.f32 %v1548, 0.0
    %v2084 = vmax.f32 %v1550, 0.0
    %v2085 = vmax.f32 %v1859, 0.0
    %v2086 = vmax.f32 %v1861, 0.0
    %v2087 = vmax.f32 %v1554, 0.0
    %v2088 = vmax.f32 %v1556, 0.0
    %v2089 = vmax.f32 %v1865, 0.0
    %v2090 = vmax.f32 %v1867, 0.0
    %v2091 = vmax.f32 %v1560, 0.0
    %v2092 = vmax.f32 %v1562, 0.0
    %v2093 = vmax.f32 %v1871, 0.0
    %v2094 = vmax.f32 %v1873, 0.0
    %v2095 = vmax.f32 %v1566, 0.0
    %v2096 = vmax.f32 %v1568, 0.0
    %v2097 = vmax.f32 %v1877, 0.0
    %v2098 = vmax.f32 %v1879, 0.0
    %v2099 = vmax.f32 %v1572, 0.0
    %v2100 = vmax.f32 %v1574, 0.0
    %v2101 = vmax.f32 %v1883, 0.0
    %v2102 = vmax.f32 %v1885, 0.0
    %v2103 = vmax.f32 %v1578, 0.0
    %v2104 = vmax.f32 %v1580, 0.0
    %v2105 = vmax.f32 %v1889, 0.0
    %v2106 = vmax.f32 %v1891, 0.0
    %v2107 = vmax.f32 %v1584, 0.0
    %v2108 = vmax.f32 %v1586, 0.0
    %v2109 = vmax.f32 %v1895, 0.0
    %v2110 = vmax.f32 %v1897, 0.0
    %v2111 = vmax.f32 %v1590, 0.0
    %v2112 = vmax.f32 %v1592, 0.0
    %v2113 = vmax.f32 %v1901, 0.0
    %v2114 = vmax.f32 %v1903, 0.0
    %v2115 = vmax.f32 %v1596, 0.0
    %v2116 = vmax.f32 %v1598, 0.0
    %v2117 = vmax.f32 %v1907, 0.0
    %v2118 = vmax.f32 %v1909, 0.0
    %v2119 = vmax.f32 %v1602, 0.0
    %v2120 = vmax.f32 %v1604, 0.0
    %v2121 = vmax.f32 %v1913, 0.0
    %v2122 = vmax.f32 %v1915, 0.0
    %v2123 = vmax.f32 %v1608, 0.0
    %v2124 = vmax.f32 %v1610, 0.0
    %v2125 = vmax.f32 %v1919, 0.0
    %v2126 = vmax.f32 %v1921, 0.0
    %v2127 = vmax.f32 %v1614, 0.0
    %v2128 = vmax.f32 %v1616, 0.0
    %v2129 = vmax.f32 %v1925, 0.0
    %v2130 = vmax.f32 %v1927, 0.0
    %v2131 = vmax.f32 %v1620, 0.0
    %v2132 = vmax.f32 %v1622, 0.0
    %v2133 = vmax.f32 %v1931, 0.0
    %v2134 = vmax.f32 %v1933, 0.0
    %v2135 = vmax.f32 %v1626, 0.0
    %v2136 = vmax.f32 %v1628, 0.0
    %v2137 = vmax.f32 %v1937, 0.0
    %v2138 = vmax.f32 %v1939, 0.0
    %v2139 = vmax.f32 %v1632, 0.0
    %v2140 = vmax.f32 %v1634, 0.0
    %v2141 = vmax.f32 %v1943, 0.0
    %v2142 = vmax.f32 %v1945, 0.0
    %v2143 = vmax.f32 %v1638, 0.0
    %v2144 = vmax.f32 %v1640, 0.0
    %v2145 = vmax.f32 %v1949, 0.0
    %v2146 = vmax.f32 %v1951, 0.0
    %v2147 = vmax.f32 %v1644, 0.0
    %v2148 = vmax.f32 %v1646, 0.0
    %v2149 = vmax.f32 %v1955, 0.0
    %v2150 = vmax.f32 %v1957, 0.0
    %v2151 = vmax.f32 %v1650, 0.0
    %v2152 = vmax.f32 %v1652, 0.0
    %v2153 = vmax.f32 %v1961, 0.0
    %v2154 = vmax.f32 %v1963, 0.0
    %v2155 = vmax.f32 %v1656, 0.0
    %v2156 = vmax.f32 %v1658, 0.0
    %v2157 = vmax.f32 %v1967, 0.0
    %v2158 = vmax.f32 %v1969, 0.0
    %v2159 = vmax.f32 %v1662, 0.0
    %v2160 = vmax.f32 %v1664, 0.0
    %v2161 = vmax.f32 %v1973, 0.0
    %v2162 = vmax.f32 %v1975, 0.0
    %v2163 = vmax.f32 %v1668, 0.0
    %v2164 = vmax.f32 %v1670, 0.0
    %v2165 = vmax.f32 %v1979, 0.0
    %v2166 = vmax.f32 %v1981, 0.0
    %v2167 = vmax.f32 %v1674, 0.0
    %v2168 = vmax.f32 %v1676, 0.0
    %v2169 = vmax.f32 %v1985, 0.0
    %v2170 = vmax.f32 %v1987, 0.0
    %v2171 = vmax.f32 %v1680, 0.0
    %v2172 = vmax.f32 %v1682, 0.0
    %v2173 = vmax.f32 %v1991, 0.0
    %v2174 = vmax.f32 %v1993, 0.0
    %v2175 = vmax.f32 %v1686, 0.0
    %v2176 = vmax.f32 %v1688, 0.0
    %v2177 = vmax.f32 %v1997, 0.0
    %v2178 = vmax.f32 %v1999, 0.0
    %v2179 = vmax.f32 %v1692, 0.0
    %v2180 = vmax.f32 %v1694, 0.0
    %v2181 = vmax.f32 %v2003, 0.0
    %v2182 = vmax.f32 %v2005, 0.0
    %v2183 = vmax.f32 %v1698, 0.0
    %v2184 = vmax.f32 %v1700, 0.0
    %v2185 = vmax.f32 %v2009, 0.0
    %v2186 = vmax.f32 %v2011, 0.0
    %v2187 = vmax.f32 %v1704, 0.0
    %v2188 = vmax.f32 %v1706, 0.0
    %v2189 = vmax.f32 %v2015, 0.0
    %v2190 = vmax.f32 %v2017, 0.0
    %v2191 = vmax.f32 %v1710, 0.0
    %v2192 = vmax.f32 %v1712, 0.0
    %v2193 = vmax.f32 %v2021, 0.0
    %v2194 = vmax.f32 %v2023, 0.0
    %v2195 = vmax.f32 %v1716, 0.0
    %v2196 = vmax.f32 %v1718, 0.0
    %v2197 = vmax.f32 %v2027, 0.0
    %v2198 = vmax.f32 %v2029, 0.0
    %v2199 = vmax.f32 %v1722, 0.0
    %v2200 = vmax.f32 %v1724, 0.0
    %v2201 = vmax.f32 %v2033, 0.0
    %v2202 = vmax.f32 %v2035, 0.0
    %v2203 = vmax.f32 %v1728, 0.0
    %v2204 = vmax.f32 %v1730, 0.0
    %v2205 = vmax.f32 %v2039, 0.0
    %v2206 = vmax.f32 %v2041, 0.0
    %v2207 = vld [vmem:[%s2] sm:$0x7]
    %v2209 = vlaneseq
    %v2210 = vshrl.u32 %v2209, 7
    %v2211 = vsub.s32 0, %v2210
    %v2212 = vrot.slane %v2207, %v2211
    %v2213 = vlaneseq
    %v2214 = vshrl.u32 %v2213, 7
    %v2215 = vsub.s32 1, %v2214
    %v2216 = vrot.slane %v2207, %v2215
    %v2217 = vlaneseq
    %v2218 = vshrl.u32 %v2217, 7
    %v2219 = vsub.s32 2, %v2218
    %v2220 = vrot.slane %v2207, %v2219
    %vm2223 = vcmask 588800
    %v2224 = vsel %vm2223, %v2220, 0
    %2226 = vmatprep.subr.mxu0 %v2104
    %2227 = vmatpush1.msra.mxu0 %v2103
    %2228 = vmatprep.subr.mxu0 %v2100
    %2229 = vmatpush1.msra.mxu0 %v2099
    %2230 = vmatprep.subr.mxu0 %v2096
    %2231 = vmatpush1.msra.mxu0 %v2095
    %2232 = vmatprep.subr.mxu0 %v2092
    %2233 = vmatpush1.msra.mxu0 %v2091
    %2234 = vmatprep.subr.mxu0 %v2088
    %2235 = vmatpush1.msra.mxu0 %v2087
    %2236 = vmatprep.subr.mxu0 %v2084
    %2237 = vmatpush1.msra.mxu0 %v2083
    %2238 = vmatprep.subr.mxu0 %v2080
    %2239 = vmatpush1.msra.mxu0 %v2079
    %2240 = vmatprep.subr.mxu0 %v2076
    %2241 = vmatpush1.msra.mxu0 %v2075
    %2242 = vmatprep.subr.mxu0 %v2072
    %2243 = vmatpush1.msra.mxu0 %v2071
    %2244 = vmatprep.subr.mxu0 %v2068
    %2245 = vmatpush1.msra.mxu0 %v2067
    %2246 = vmatprep.subr.mxu0 %v2064
    %2247 = vmatpush1.msra.mxu0 %v2063
    %2248 = vmatprep.subr.mxu0 %v2060
    %2249 = vmatpush1.msra.mxu0 %v2059
    %2250 = vmatprep.subr.mxu0 %v2056
    %2251 = vmatpush1.msra.mxu0 %v2055
    %2252 = vmatprep.subr.mxu0 %v2052
    %2253 = vmatpush1.msra.mxu0 %v2051
    %2254 = vmatprep.subr.mxu0 %v2048
    %2255 = vmatpush1.msra.mxu0 %v2047
    %2256 = vmatprep.subr.mxu0 %v2044
    %2257 = vmatpush1.msra.mxu0 %v2043
    %2258 = vmatprep.subr.mxu0 %v2168
    %2259 = vmatpush2.msra.mxu0 %v2167
    %2260 = vmatprep.subr.mxu0 %v2164
    %2261 = vmatpush2.msra.mxu0 %v2163
    %2262 = vmatprep.subr.mxu0 %v2160
    %2263 = vmatpush2.msra.mxu0 %v2159
    %2264 = vmatprep.subr.mxu0 %v2156
    %2265 = vmatpush2.msra.mxu0 %v2155
    %2266 = vmatprep.subr.mxu0 %v2152
    %2267 = vmatpush2.msra.mxu0 %v2151
    %2268 = vmatprep.subr.mxu0 %v2148
    %2269 = vmatpush2.msra.mxu0 %v2147
    %2270 = vmatprep.subr.mxu0 %v2144
    %2271 = vmatpush2.msra.mxu0 %v2143
    %2272 = vmatprep.subr.mxu0 %v2140
    %2273 = vmatpush2.msra.mxu0 %v2139
    %2274 = vmatprep.subr.mxu0 %v2136
    %2275 = vmatpush2.msra.mxu0 %v2135
    %2276 = vmatprep.subr.mxu0 %v2132
    %2277 = vmatpush2.msra.mxu0 %v2131
    %2278 = vmatprep.subr.mxu0 %v2128
    %2279 = vmatpush2.msra.mxu0 %v2127
    %2280 = vmatprep.subr.mxu0 %v2124
    %2281 = vmatpush2.msra.mxu0 %v2123
    %2282 = vmatprep.subr.mxu0 %v2120
    %2283 = vmatpush2.msra.mxu0 %v2119
    %2284 = vmatprep.subr.mxu0 %v2116
    %2285 = vmatpush2.msra.mxu0 %v2115
    %2286 = vmatprep.subr.mxu0 %v2112
    %2287 = vmatpush2.msra.mxu0 %v2111
    %2288 = vmatprep.subr.mxu0 %v2108
    %2289 = vmatpush2.msra.mxu0 %v2107
    %2290 = vmatprep.mubr.f32.mxu0 %v2216
    %2291 = vmatmul.mubr.f32.gmra.mxu0 %v2212
    %v2292 = vpop.f32.mrf.mxu0
    %v2293 = vadd.f32 0.0, %v2292
    %v2294 = vpop.f32.mrf.mxu0
    %v2295 = vadd.f32 0.0, %v2294
    %2296 = vdwg.mxu0
    %2297 = vmatprep.subr.mxu0 0.0
    %2298 = vmatpush1.msra.mxu0 0.0
    %2299 = vmatprep.subr.mxu0 0.0
    %2300 = vmatpush1.msra.mxu0 0.0
    %2301 = vmatprep.subr.mxu0 0.0
    %2302 = vmatpush1.msra.mxu0 0.0
    %2303 = vmatprep.subr.mxu0 0.0
    %2304 = vmatpush1.msra.mxu0 0.0
    %2305 = vmatprep.subr.mxu0 0.0
    %2306 = vmatpush1.msra.mxu0 0.0
    %2307 = vmatprep.subr.mxu0 0.0
    %2308 = vmatpush1.msra.mxu0 0.0
    %2309 = vmatprep.subr.mxu0 0.0
    %2310 = vmatpush1.msra.mxu0 0.0
    %2311 = vmatprep.subr.mxu0 %v2204
    %2312 = vmatpush1.msra.mxu0 %v2203
    %2313 = vmatprep.subr.mxu0 %v2200
    %2314 = vmatpush1.msra.mxu0 %v2199
    %2315 = vmatprep.subr.mxu0 %v2196
    %2316 = vmatpush1.msra.mxu0 %v2195
    %2317 = vmatprep.subr.mxu0 %v2192
    %2318 = vmatpush1.msra.mxu0 %v2191
    %2319 = vmatprep.subr.mxu0 %v2188
    %2320 = vmatpush1.msra.mxu0 %v2187
    %2321 = vmatprep.subr.mxu0 %v2184
    %2322 = vmatpush1.msra.mxu0 %v2183
    %2323 = vmatprep.subr.mxu0 %v2180
    %2324 = vmatpush1.msra.mxu0 %v2179
    %2325 = vmatprep.subr.mxu0 %v2176
    %2326 = vmatpush1.msra.mxu0 %v2175
    %2327 = vmatprep.subr.mxu0 %v2172
    %2328 = vmatpush1.msra.mxu0 %v2171
    %2329 = vmatprep.subr.mxu0 0.0
    %2330 = vmatpush2.msra.mxu0 0.0
    %2331 = vmatprep.subr.mxu0 0.0
    %2332 = vmatpush2.msra.mxu0 0.0
    %2333 = vmatprep.subr.mxu0 0.0
    %2334 = vmatpush2.msra.mxu0 0.0
    %2335 = vmatprep.subr.mxu0 0.0
    %2336 = vmatpush2.msra.mxu0 0.0
    %2337 = vmatprep.subr.mxu0 0.0
    %2338 = vmatpush2.msra.mxu0 0.0
    %2339 = vmatprep.subr.mxu0 0.0
    %2340 = vmatpush2.msra.mxu0 0.0
    %2341 = vmatprep.subr.mxu0 0.0
    %2342 = vmatpush2.msra.mxu0 0.0
    %2343 = vmatprep.subr.mxu0 0.0
    %2344 = vmatpush2.msra.mxu0 0.0
    %2345 = vmatprep.subr.mxu0 0.0
    %2346 = vmatpush2.msra.mxu0 0.0
    %2347 = vmatprep.subr.mxu0 0.0
    %2348 = vmatpush2.msra.mxu0 0.0
    %2349 = vmatprep.subr.mxu0 0.0
    %2350 = vmatpush2.msra.mxu0 0.0
    %2351 = vmatprep.subr.mxu0 0.0
    %2352 = vmatpush2.msra.mxu0 0.0
    %2353 = vmatprep.subr.mxu0 0.0
    %2354 = vmatpush2.msra.mxu0 0.0
    %2355 = vmatprep.subr.mxu0 0.0
    %2356 = vmatpush2.msra.mxu0 0.0
    %2357 = vmatprep.subr.mxu0 0.0
    %2358 = vmatpush2.msra.mxu0 0.0
    %2359 = vmatprep.subr.mxu0 0.0
    %2360 = vmatpush2.msra.mxu0 0.0
    %2361 = vmatprep.mubr.f32.mxu0 0.0
    %2362 = vmatmul.mubr.f32.gmra.mxu0 %v2224
    %v2363 = vpop.f32.mrf.mxu0
    %v2364 = vadd.f32 %v2293, %v2363
    %v2365 = vpop.f32.mrf.mxu0
    %v2366 = vadd.f32 %v2295, %v2365
    %2367 = vdwg.mxu0
    %2368 = vmatprep.subr.mxu0 %v2106
    %2369 = vmatpush1.msra.mxu0 %v2105
    %2370 = vmatprep.subr.mxu0 %v2102
    %2371 = vmatpush1.msra.mxu0 %v2101
    %2372 = vmatprep.subr.mxu0 %v2098
    %2373 = vmatpush1.msra.mxu0 %v2097
    %2374 = vmatprep.subr.mxu0 %v2094
    %2375 = vmatpush1.msra.mxu0 %v2093
    %2376 = vmatprep.subr.mxu0 %v2090
    %2377 = vmatpush1.msra.mxu0 %v2089
    %2378 = vmatprep.subr.mxu0 %v2086
    %2379 = vmatpush1.msra.mxu0 %v2085
    %2380 = vmatprep.subr.mxu0 %v2082
    %2381 = vmatpush1.msra.mxu0 %v2081
    %2382 = vmatprep.subr.mxu0 %v2078
    %2383 = vmatpush1.msra.mxu0 %v2077
    %2384 = vmatprep.subr.mxu0 %v2074
    %2385 = vmatpush1.msra.mxu0 %v2073
    %2386 = vmatprep.subr.mxu0 %v2070
    %2387 = vmatpush1.msra.mxu0 %v2069
    %2388 = vmatprep.subr.mxu0 %v2066
    %2389 = vmatpush1.msra.mxu0 %v2065
    %2390 = vmatprep.subr.mxu0 %v2062
    %2391 = vmatpush1.msra.mxu0 %v2061
    %2392 = vmatprep.subr.mxu0 %v2058
    %2393 = vmatpush1.msra.mxu0 %v2057
    %2394 = vmatprep.subr.mxu0 %v2054
    %2395 = vmatpush1.msra.mxu0 %v2053
    %2396 = vmatprep.subr.mxu0 %v2050
    %2397 = vmatpush1.msra.mxu0 %v2049
    %2398 = vmatprep.subr.mxu0 %v2046
    %2399 = vmatpush1.msra.mxu0 %v2045
    %2400 = vmatprep.subr.mxu0 %v2170
    %2401 = vmatpush2.msra.mxu0 %v2169
    %2402 = vmatprep.subr.mxu0 %v2166
    %2403 = vmatpush2.msra.mxu0 %v2165
    %2404 = vmatprep.subr.mxu0 %v2162
    %2405 = vmatpush2.msra.mxu0 %v2161
    %2406 = vmatprep.subr.mxu0 %v2158
    %2407 = vmatpush2.msra.mxu0 %v2157
    %2408 = vmatprep.subr.mxu0 %v2154
    %2409 = vmatpush2.msra.mxu0 %v2153
    %2410 = vmatprep.subr.mxu0 %v2150
    %2411 = vmatpush2.msra.mxu0 %v2149
    %2412 = vmatprep.subr.mxu0 %v2146
    %2413 = vmatpush2.msra.mxu0 %v2145
    %2414 = vmatprep.subr.mxu0 %v2142
    %2415 = vmatpush2.msra.mxu0 %v2141
    %2416 = vmatprep.subr.mxu0 %v2138
    %2417 = vmatpush2.msra.mxu0 %v2137
    %2418 = vmatprep.subr.mxu0 %v2134
    %2419 = vmatpush2.msra.mxu0 %v2133
    %2420 = vmatprep.subr.mxu0 %v2130
    %2421 = vmatpush2.msra.mxu0 %v2129
    %2422 = vmatprep.subr.mxu0 %v2126
    %2423 = vmatpush2.msra.mxu0 %v2125
    %2424 = vmatprep.subr.mxu0 %v2122
    %2425 = vmatpush2.msra.mxu0 %v2121
    %2426 = vmatprep.subr.mxu0 %v2118
    %2427 = vmatpush2.msra.mxu0 %v2117
    %2428 = vmatprep.subr.mxu0 %v2114
    %2429 = vmatpush2.msra.mxu0 %v2113
    %2430 = vmatprep.subr.mxu0 %v2110
    %2431 = vmatpush2.msra.mxu0 %v2109
    %2432 = vmatprep.mubr.f32.mxu0 %v2216
    %2433 = vmatmul.mubr.f32.gmra.mxu0 %v2212
    %v2434 = vpop.f32.mrf.mxu0
    %v2435 = vadd.f32 0.0, %v2434
    %v2436 = vpop.f32.mrf.mxu0
    %v2437 = vadd.f32 0.0, %v2436
    %2438 = vdwg.mxu0
    %2439 = vmatprep.subr.mxu0 0.0
    %2440 = vmatpush1.msra.mxu0 0.0
    %2441 = vmatprep.subr.mxu0 0.0
    %2442 = vmatpush1.msra.mxu0 0.0
    %2443 = vmatprep.subr.mxu0 0.0
    %2444 = vmatpush1.msra.mxu0 0.0
    %2445 = vmatprep.subr.mxu0 0.0
    %2446 = vmatpush1.msra.mxu0 0.0
    %2447 = vmatprep.subr.mxu0 0.0
    %2448 = vmatpush1.msra.mxu0 0.0
    %2449 = vmatprep.subr.mxu0 0.0
    %2450 = vmatpush1.msra.mxu0 0.0
    %2451 = vmatprep.subr.mxu0 0.0
    %2452 = vmatpush1.msra.mxu0 0.0
    %2453 = vmatprep.subr.mxu0 %v2206
    %2454 = vmatpush1.msra.mxu0 %v2205
    %2455 = vmatprep.subr.mxu0 %v2202
    %2456 = vmatpush1.msra.mxu0 %v2201
    %2457 = vmatprep.subr.mxu0 %v2198
    %2458 = vmatpush1.msra.mxu0 %v2197
    %2459 = vmatprep.subr.mxu0 %v2194
    %2460 = vmatpush1.msra.mxu0 %v2193
    %2461 = vmatprep.subr.mxu0 %v2190
    %2462 = vmatpush1.msra.mxu0 %v2189
    %2463 = vmatprep.subr.mxu0 %v2186
    %2464 = vmatpush1.msra.mxu0 %v2185
    %2465 = vmatprep.subr.mxu0 %v2182
    %2466 = vmatpush1.msra.mxu0 %v2181
    %2467 = vmatprep.subr.mxu0 %v2178
    %2468 = vmatpush1.msra.mxu0 %v2177
    %2469 = vmatprep.subr.mxu0 %v2174
    %2470 = vmatpush1.msra.mxu0 %v2173
    %2471 = vmatprep.subr.mxu0 0.0
    %2472 = vmatpush2.msra.mxu0 0.0
    %2473 = vmatprep.subr.mxu0 0.0
    %2474 = vmatpush2.msra.mxu0 0.0
    %2475 = vmatprep.subr.mxu0 0.0
    %2476 = vmatpush2.msra.mxu0 0.0
    %2477 = vmatprep.subr.mxu0 0.0
    %2478 = vmatpush2.msra.mxu0 0.0
    %2479 = vmatprep.subr.mxu0 0.0
    %2480 = vmatpush2.msra.mxu0 0.0
    %2481 = vmatprep.subr.mxu0 0.0
    %2482 = vmatpush2.msra.mxu0 0.0
    %2483 = vmatprep.subr.mxu0 0.0
    %2484 = vmatpush2.msra.mxu0 0.0
    %2485 = vmatprep.subr.mxu0 0.0
    %2486 = vmatpush2.msra.mxu0 0.0
    %2487 = vmatprep.subr.mxu0 0.0
    %2488 = vmatpush2.msra.mxu0 0.0
    %2489 = vmatprep.subr.mxu0 0.0
    %2490 = vmatpush2.msra.mxu0 0.0
    %2491 = vmatprep.subr.mxu0 0.0
    %2492 = vmatpush2.msra.mxu0 0.0
    %2493 = vmatprep.subr.mxu0 0.0
    %2494 = vmatpush2.msra.mxu0 0.0
    %2495 = vmatprep.subr.mxu0 0.0
    %2496 = vmatpush2.msra.mxu0 0.0
    %2497 = vmatprep.subr.mxu0 0.0
    %2498 = vmatpush2.msra.mxu0 0.0
    %2499 = vmatprep.subr.mxu0 0.0
    %2500 = vmatpush2.msra.mxu0 0.0
    %2501 = vmatprep.subr.mxu0 0.0
    %2502 = vmatpush2.msra.mxu0 0.0
    %2503 = vmatprep.mubr.f32.mxu0 0.0
    %2504 = vmatmul.mubr.f32.gmra.mxu0 %v2224
    %v2505 = vpop.f32.mrf.mxu0
    %v2506 = vadd.f32 %v2435, %v2505
    %v2507 = vpop.f32.mrf.mxu0
    %v2508 = vadd.f32 %v2437, %v2507
    %2509 = vdwg.mxu0
    %v2510 = vmul.f32 %v659, %v2364
    %v2511 = vmul.f32 %v659, %v2366
    %v2512 = vmul.f32 %v659, %v2506
    %v2513 = vmul.f32 %v659, %v2508
    %v2514 = vmax.f32 %v2510, 0.0
    %v2515 = vmax.f32 %v2511, 0.0
    %v2516 = vmax.f32 %v2512, 0.0
    %v2517 = vmax.f32 %v2513, 0.0
    %v2522 = vcombine.low %v2514, %v2515
    %v2523 = vcombine.low %v2516, %v2517
    %v2525 = vunpack.c.l.s4 1966171168
    %v2526 = vunpack.c.0.s8 %v2525
    %v2527 = vlaneseq
    %v2528 = vshrl.u32 %v2527, 7
    %v2529 = vsub.s32 %v2526, %v2528
    %v2530 = vrot.slane %v2522, %v2529
    %v2532 = vunpack.c.l.s4 1966171168
    %v2533 = vunpack.c.0.s8 %v2532
    %v2534 = vlaneseq
    %v2535 = vshrl.u32 %v2534, 7
    %v2536 = vsub.s32 %v2533, %v2535
    %v2537 = vrot.slane %v2523, %v2536
    %v2538 = vcombine.low %v2530, %v2537
    %v2540 = vunpack.c.l.s4 1966171168
    %v2541 = vunpack.c.0.s8 %v2540
    %v2542 = vlaneseq
    %v2543 = vshrl.u32 %v2542, 7
    %v2544 = vsub.s32 %v2541, %v2543
    %v2545 = vrot.slane %v2538, %v2544
    %v2547 = vlaneseq
    %vm2548 = vcmp.ge.s32.totalorder %v2547, 0
    %vm2549 = vcmp.lt.s32.totalorder %v2547, 512
    %vm2550 = vmand %vm2548, %vm2549
    %2551 = vst.msk [vmem:[#allocation4] sm:$0xf] %vm2550, %v2545
    // Predicated region
    $region52: #{chanal_forward.1} parent=1 // pred_check
      _
    $region53: #{chanal_forward.1} parent=1 // pred_check_branch
      %2553 = sbr.rel (0) target = $region55
    $region54: #{chanal_forward.1} parent=1 // pred_region
      %s2555 = ssub.s32 64, 64
      %2556 = vsyncadd [#allocation5], %s2555
      %s2558 = sshll.u32 [#allocation4], 4
      %s2559 = int_to_ptr.vmem [resolvable:$true] %s2558
      %2561 = dma.vmem_to_hbm [thread:$0]  %s2559, 64, %s5, [#allocation5]
    $region55: #{chanal_forward.1} parent=1 // pred_fallthru
      _
    // Predicated region
    $region56: #{chanal_forward.1} parent=1 // pred_check
      _
    $region57: #{chanal_forward.1} parent=1 // pred_check_branch
      %2563 = sbr.rel (0) target = $region59
    $region58: #{chanal_forward.1} parent=1 // pred_region
      %2564 = dma.done [#allocation5], 64
    $region59: #{chanal_forward.1} parent=1 // pred_fallthru
      _
    %2565 = vsyncpa [#allocation5], 1
  %2566 = vsyncmov [#allocation3]
  %s2567 = vpop.sfrf %2566
  %p2568 = scmp.eq.s32.totalorder %s2567, 0
  %p2569 = pneg %p2568
  %2571 = shalt.err (%p2569)

</llo_original>
